<compile_context>
chip_gen: v7x
topology: tpu7x:2x2x1
jax: 0.10.0
libtpu: 0.0.40
codegen_flags: <defaults>
</compile_context>

<pallas_src>
import jax
import jax.numpy as jnp
from jax.experimental import pallas as pl
from jax.experimental.pallas import tpu as pltpu

HID1 = 384     # 300 padded to 3 x 128 lanes
HID2 = 128     # 100 padded to 128 lanes
OUT_PAD = 128  # 10-class output padded to a full lane-dense vreg width


def mlp_kernel(x_ref, w1_ref, b1_ref, w2_ref, b2_ref, w3_ref, b3_ref, o_ref):
    # Layer 1: Linear(784 -> 384-padded) + ReLU   (bf16 MXU, f32 accumulate)
    h1 = jnp.dot(x_ref[...], w1_ref[...], preferred_element_type=jnp.float32)
    h1 = jnp.maximum(h1 + b1_ref[...], 0.0)
    # Layer 2: Linear(384 -> 128-padded) + ReLU
    h2 = jnp.dot(h1.astype(jnp.bfloat16), w2_ref[...],
                 preferred_element_type=jnp.float32)
    h2 = jnp.maximum(h2 + b2_ref[...], 0.0)
    # Layer 3: Linear(128 -> 128-padded) + Sigmoid
    logits = jnp.dot(h2.astype(jnp.bfloat16), w3_ref[...],
                     preferred_element_type=jnp.float32)
    logits = logits + b3_ref[...]
    # sigmoid = 1 / (1 + exp(-x)); exp + approx reciprocal both run on the EUP.
    sig = pl.reciprocal(1.0 + jnp.exp(-logits), approx=True)
    o_ref[...] = sig.astype(o_ref.dtype)   # bf16 lane-dense writeback


def _round_up(n, m):
    return ((n + m - 1) // m) * m


def _num_tensorcores():
    """TensorCores per chip (v7x=2, v5e/v6e=1); conservative fallback is 1."""
    try:
        info = pltpu.get_tpu_info()
    except Exception:
        return 1
    for attr in ("num_cores", "tensorcores_per_chip", "num_tensorcores", "core_count"):
        v = getattr(info, attr, None)
        if isinstance(v, int) and v >= 1:
            return v
    return 1


def _pick_batch_tile(B, batch_tile, num_cores):
    """Rows per grid step: 16-row floor (bf16 sublane packing), 256-aligned once
    the batch is big enough (full MXU M-tiles), capped by `batch_tile`, and on
    multi-TC chips split so every TensorCore gets at least one grid step."""
    need = _round_up(max(B, 16), 16)
    if need <= 256:
        return need                               # one small, 16-aligned step
    n256 = _round_up(need, 256)
    bt = min(max(256, _round_up(batch_tile, 256)), n256)
    if num_cores >= 2:                            # v7x: feed both TensorCores
        bt = min(bt, max(256, _round_up(pl.cdiv(n256, num_cores), 256)))
    return bt


def simple_net_forward(x, params, *, batch_tile=2048):
    """x: (B, 784) float32. params: (in,out) f32 weights + (1,out) f32 biases."""
    B, D_in = x.shape
    assert D_in == 784

    num_cores = _num_tensorcores()
    bt = _pick_batch_tile(B, batch_tile, num_cores)
    B_pad = _round_up(B, bt)
    grid_steps = B_pad // bt

    w1, b1, w2, b2, w3, b3 = (params[k] for k in ("w1", "b1", "w2", "b2", "w3", "b3"))

    # Zero-pad every layer width to a multiple of 128 lanes. The padded weight
    # rows/cols and biases are zero and ReLU(0)=0, so padded columns stay
    # exactly 0 and never leak into the real outputs.
    w1p = jnp.zeros((784, HID1), jnp.float32).at[:, :300].set(w1)
    b1p = jnp.zeros((1, HID1), jnp.float32).at[:, :300].set(b1)
    w2p = jnp.zeros((HID1, HID2), jnp.float32).at[:300, :100].set(w2)
    b2p = jnp.zeros((1, HID2), jnp.float32).at[:, :100].set(b2)
    w3p = jnp.zeros((HID2, OUT_PAD), jnp.float32).at[:100, :10].set(w3)
    b3p = jnp.zeros((1, OUT_PAD), jnp.float32).at[:, :10].set(b3)

    # bf16 activations/weights (half DMA bytes, full-rate MXU); biases stay f32.
    xb = x.astype(jnp.bfloat16)
    if B_pad > B:
        xb = jnp.pad(xb, ((0, B_pad - B), (0, 0)))
    w1b, w2b, w3b = (w.astype(jnp.bfloat16) for w in (w1p, w2p, w3p))

    def full_spec(arr):
        # Whole array resident in VMEM every grid step (constant index_map).
        # Default double-buffering kept: all weights + biases total <1 MB.
        return pl.BlockSpec(arr.shape, lambda i: (0, 0))

    dim_sem = ("parallel",)
    if num_cores >= 2 and grid_steps % num_cores == 0:
        core_parallel = getattr(pltpu, "CORE_PARALLEL", None)
        if core_parallel is not None:
            dim_sem = (core_parallel,)   # explicit megacore split on v7x

    out = pl.pallas_call(
        mlp_kernel,
        out_shape=jax.ShapeDtypeStruct((B_pad, OUT_PAD), jnp.bfloat16),
        grid_spec=pltpu.PrefetchScalarGridSpec(
            num_scalar_prefetch=0,
            grid=(grid_steps,),
            in_specs=[
                pl.BlockSpec((bt, 784), lambda i: (i, 0)),   # x batch tile
                full_spec(w1b), full_spec(b1p),
                full_spec(w2b), full_spec(b2p),
                full_spec(w3b), full_spec(b3p),
            ],
            out_specs=pl.BlockSpec((bt, OUT_PAD), lambda i: (i, 0)),
        ),
        # Working set at bt=2048 is ~10 MB (x 2x3.2 MB, out 2x0.5 MB, weights
        # ~1.5 MB) — well under the default scoped-VMEM limit on every
        # generation; set vmem_limit_bytes explicitly if batch_tile > 4096.
        compiler_params=pltpu.CompilerParams(dimension_semantics=dim_sem),
    )(xb, w1b, b1p, w2b, b2p, w3b, b3p)

    # Drop batch padding + the 118 padded output lanes; back to f32.
    return out[:B, :10].astype(jnp.float32)


def init_params(key):
    """Deterministic synthetic init matching nn.Linear shapes.
    PyTorch Linear weight is (out, in); we store the transpose (in, out)."""
    ks = jax.random.split(key, 6)

    def linear(kw, kb, fan_in, fan_out):
        bound = 1.0 / (fan_in ** 0.5)  # PyTorch default U(-1/sqrt(in), 1/sqrt(in))
        w = jax.random.uniform(kw, (fan_in, fan_out), jnp.float32, -bound, bound)
        b = jax.random.uniform(kb, (1, fan_out), jnp.float32, -bound, bound)
        return w, b

    w1, b1 = linear(ks[0], ks[1], 784, 300)
    w2, b2 = linear(ks[2], ks[3], 300, 100)
    w3, b3 = linear(ks[4], ks[5], 100, 10)
    return dict(w1=w1, b1=b1, w2=w2, b2=b2, w3=w3, b3=b3)


def _reference(x, p):
    """Mirrors the kernel's precision scheme: bf16 matmul inputs, f32 accum,
    f32 bias/activation, bf16 output rounding."""
    h1 = jnp.dot(x.astype(jnp.bfloat16), p["w1"].astype(jnp.bfloat16),
                 preferred_element_type=jnp.float32) + p["b1"]
    h1 = jnp.maximum(h1, 0.0)
    h2 = jnp.dot(h1.astype(jnp.bfloat16), p["w2"].astype(jnp.bfloat16),
                 preferred_element_type=jnp.float32) + p["b2"]
    h2 = jnp.maximum(h2, 0.0)
    logits = jnp.dot(h2.astype(jnp.bfloat16), p["w3"].astype(jnp.bfloat16),
                     preferred_element_type=jnp.float32) + p["b3"]
    return jax.nn.sigmoid(logits).astype(jnp.bfloat16).astype(jnp.float32)


if __name__ == "__main__":
    key = jax.random.PRNGKey(0)
    k_param, k_x = jax.random.split(key)
    params = init_params(k_param)

    B = 8  # small demo batch; wrapper pads/tiles larger batches automatically
    x = jax.random.normal(k_x, (B, 784), dtype=jnp.float32)

    out = simple_net_forward(x, params)
    out = jax.block_until_ready(out)

    ref = _reference(x, params)
    assert out.shape == (B, 10)
    # Tolerance covers the approx-reciprocal sigmoid + bf16 output rounding.
    assert jnp.allclose(out, ref, atol=1e-2, rtol=1e-2), float(jnp.max(jnp.abs(out - ref)))
    print("KERNEL_OK")
</pallas_src>

<mosaic_0001>
module attributes {stable_mosaic.version = 11 : i64} {
  func.func @mlp_kernel(%arg0: i32, %arg1: memref<16x784xbf16, #tpu.memory_space<vmem>>, %arg2: memref<784x384xbf16, #tpu.memory_space<vmem>>, %arg3: memref<1x384xf32, #tpu.memory_space<vmem>>, %arg4: memref<384x128xbf16, #tpu.memory_space<vmem>>, %arg5: memref<1x128xf32, #tpu.memory_space<vmem>>, %arg6: memref<128x128xbf16, #tpu.memory_space<vmem>>, %arg7: memref<1x128xf32, #tpu.memory_space<vmem>>, %arg8: memref<16x128xbf16, #tpu.memory_space<vmem>>) attributes {dimension_semantics = [#tpu.dimension_semantics<parallel>], iteration_bounds = array<i64: 1>, scalar_prefetch = 0 : i64, scratch_operands = 0 : i64, tpu.core_type = #tpu.core_type<tc>, window_params = [{transform_indices = @transform_0, window_bounds = array<i64: 16, 784>}, {pipeline_mode = #tpu.pipeline_mode<synchronous>, transform_indices = @transform_1, window_bounds = array<i64: 784, 384>}, {pipeline_mode = #tpu.pipeline_mode<synchronous>, transform_indices = @transform_2, window_bounds = array<i64: 1, 384>}, {pipeline_mode = #tpu.pipeline_mode<synchronous>, transform_indices = @transform_3, window_bounds = array<i64: 384, 128>}, {pipeline_mode = #tpu.pipeline_mode<synchronous>, transform_indices = @transform_4, window_bounds = array<i64: 1, 128>}, {pipeline_mode = #tpu.pipeline_mode<synchronous>, transform_indices = @transform_5, window_bounds = array<i64: 128, 128>}, {pipeline_mode = #tpu.pipeline_mode<synchronous>, transform_indices = @transform_6, window_bounds = array<i64: 1, 128>}, {transform_indices = @transform_7, window_bounds = array<i64: 16, 128>}]} {
    %c0 = arith.constant 0 : index
    %c0_0 = arith.constant 0 : index
    %0 = vector.load %arg1[%c0, %c0_0] : memref<16x784xbf16, #tpu.memory_space<vmem>>, vector<16x784xbf16>
    %c0_1 = arith.constant 0 : index
    %c0_2 = arith.constant 0 : index
    %1 = vector.load %arg2[%c0_1, %c0_2] : memref<784x384xbf16, #tpu.memory_space<vmem>>, vector<784x384xbf16>
    %cst = arith.constant dense<0.000000e+00> : vector<16x384xf32>
    %2 = tpu.matmul %0, %1, %cst {dimension_numbers = #tpu.dot_dimension_numbers<[1], [0], [0], [1], [0, 0, 1, 1], [], []>} : vector<16x784xbf16>, vector<784x384xbf16>, vector<16x384xf32> -> vector<16x384xf32>
    %c0_3 = arith.constant 0 : index
    %c0_4 = arith.constant 0 : index
    %3 = vector.load %arg3[%c0_3, %c0_4] : memref<1x384xf32, #tpu.memory_space<vmem>>, vector<1x384xf32>
    %4 = vector.broadcast %3 : vector<1x384xf32> to vector<16x384xf32>
    %5 = arith.addf %2, %4 : vector<16x384xf32>
    %cst_5 = arith.constant 0.000000e+00 : f32
    %6 = vector.broadcast %cst_5 : f32 to vector<16x384xf32>
    %7 = arith.maximumf %5, %6 : vector<16x384xf32>
    %8 = arith.truncf %7 : vector<16x384xf32> to vector<16x384xbf16>
    %c0_6 = arith.constant 0 : index
    %c0_7 = arith.constant 0 : index
    %9 = vector.load %arg4[%c0_6, %c0_7] : memref<384x128xbf16, #tpu.memory_space<vmem>>, vector<384x128xbf16>
    %cst_8 = arith.constant dense<0.000000e+00> : vector<16x128xf32>
    %10 = tpu.matmul %8, %9, %cst_8 {dimension_numbers = #tpu.dot_dimension_numbers<[1], [0], [0], [1], [0, 0, 1, 1], [], []>} : vector<16x384xbf16>, vector<384x128xbf16>, vector<16x128xf32> -> vector<16x128xf32>
    %c0_9 = arith.constant 0 : index
    %c0_10 = arith.constant 0 : index
    %11 = vector.load %arg5[%c0_9, %c0_10] : memref<1x128xf32, #tpu.memory_space<vmem>>, vector<1x128xf32>
    %12 = vector.broadcast %11 : vector<1x128xf32> to vector<16x128xf32>
    %13 = arith.addf %10, %12 : vector<16x128xf32>
    %cst_11 = arith.constant 0.000000e+00 : f32
    %14 = vector.broadcast %cst_11 : f32 to vector<16x128xf32>
    %15 = arith.maximumf %13, %14 : vector<16x128xf32>
    %16 = arith.truncf %15 : vector<16x128xf32> to vector<16x128xbf16>
    %c0_12 = arith.constant 0 : index
    %c0_13 = arith.constant 0 : index
    %17 = vector.load %arg6[%c0_12, %c0_13] : memref<128x128xbf16, #tpu.memory_space<vmem>>, vector<128x128xbf16>
    %cst_14 = arith.constant dense<0.000000e+00> : vector<16x128xf32>
    %18 = tpu.matmul %16, %17, %cst_14 {dimension_numbers = #tpu.dot_dimension_numbers<[1], [0], [0], [1], [0, 0, 1, 1], [], []>} : vector<16x128xbf16>, vector<128x128xbf16>, vector<16x128xf32> -> vector<16x128xf32>
    %c0_15 = arith.constant 0 : index
    %c0_16 = arith.constant 0 : index
    %19 = vector.load %arg7[%c0_15, %c0_16] : memref<1x128xf32, #tpu.memory_space<vmem>>, vector<1x128xf32>
    %20 = vector.broadcast %19 : vector<1x128xf32> to vector<16x128xf32>
    %21 = arith.addf %18, %20 : vector<16x128xf32>
    %cst_17 = arith.constant 0.000000e+00 : f32
    %22 = vector.broadcast %cst_17 : f32 to vector<16x128xf32>
    %23 = arith.subf %22, %21 : vector<16x128xf32>
    %24 = math.exp %23 : vector<16x128xf32>
    %cst_18 = arith.constant 1.000000e+00 : f32
    %25 = vector.broadcast %cst_18 : f32 to vector<16x128xf32>
    %26 = arith.addf %25, %24 : vector<16x128xf32>
    %27 = tpu.reciprocal %26 {approx = true} : vector<16x128xf32> -> vector<16x128xf32>
    %28 = arith.truncf %27 : vector<16x128xf32> to vector<16x128xbf16>
    %c0_19 = arith.constant 0 : index
    %c0_20 = arith.constant 0 : index
    %29 = vector.load %arg8[%c0_19, %c0_20] : memref<16x128xbf16, #tpu.memory_space<vmem>>, vector<16x128xbf16>
    tpu.vector_store %arg8[%c0_19, %c0_20], %28 {strides = array<i32>} : memref<16x128xbf16, #tpu.memory_space<vmem>>, vector<16x128xbf16>,
    return
  }
  func.func @transform_0(%arg0: i32) -> (i32, i32) {
    %c0_i32 = arith.constant 0 : i32
    %c0_i32_0 = arith.constant 0 : i32
    return %arg0, %c0_i32 : i32, i32
  }
  func.func @transform_1(%arg0: i32) -> (i32, i32) {
    %c0_i32 = arith.constant 0 : i32
    %c0_i32_0 = arith.constant 0 : i32
    %c0_i32_1 = arith.constant 0 : i32
    return %c0_i32, %c0_i32_0 : i32, i32
  }
  func.func @transform_2(%arg0: i32) -> (i32, i32) {
    %c0_i32 = arith.constant 0 : i32
    %c0_i32_0 = arith.constant 0 : i32
    %c0_i32_1 = arith.constant 0 : i32
    return %c0_i32, %c0_i32_0 : i32, i32
  }
  func.func @transform_3(%arg0: i32) -> (i32, i32) {
    %c0_i32 = arith.constant 0 : i32
    %c0_i32_0 = arith.constant 0 : i32
    %c0_i32_1 = arith.constant 0 : i32
    return %c0_i32, %c0_i32_0 : i32, i32
  }
  func.func @transform_4(%arg0: i32) -> (i32, i32) {
    %c0_i32 = arith.constant 0 : i32
    %c0_i32_0 = arith.constant 0 : i32
    %c0_i32_1 = arith.constant 0 : i32
    return %c0_i32, %c0_i32_0 : i32, i32
  }
  func.func @transform_5(%arg0: i32) -> (i32, i32) {
    %c0_i32 = arith.constant 0 : i32
    %c0_i32_0 = arith.constant 0 : i32
    %c0_i32_1 = arith.constant 0 : i32
    return %c0_i32, %c0_i32_0 : i32, i32
  }
  func.func @transform_6(%arg0: i32) -> (i32, i32) {
    %c0_i32 = arith.constant 0 : i32
    %c0_i32_0 = arith.constant 0 : i32
    %c0_i32_1 = arith.constant 0 : i32
    return %c0_i32, %c0_i32_0 : i32, i32
  }
  func.func @transform_7(%arg0: i32) -> (i32, i32) {
    %c0_i32 = arith.constant 0 : i32
    %c0_i32_0 = arith.constant 0 : i32
    return %arg0, %c0_i32 : i32, i32
  }
}

</mosaic_0001>

<llo_original>
// kernel: tpu_custom_call.1
$region0: #{tpu_custom_call.1}
  #allocation0 [shape = 'u32[]', space=smem, size = 0x4, offset = 0x4, fixed_abs, tag = 'smem constant byte address 0x4 - core index']
  #allocation1 [shape = 'u32[144,128]{1,0:T(1,128)}', space=vmem, size = 0x12000, scoped, tag = 'internal scratch']
  %s0 = inlined_call_operand.hbm [shape: bf16[16,784], index: 0, kind: input, shape index: {}]
  %s1 = inlined_call_operand.hbm [shape: bf16[784,384], index: 1, kind: input, shape index: {}]
  %s2 = inlined_call_operand.vmem [shape: f32[1,384], index: 2, kind: input, shape index: {}]
  %s3 = inlined_call_operand.hbm [shape: bf16[384,128], index: 3, kind: input, shape index: {}]
  %s4 = inlined_call_operand.vmem [shape: f32[1,128], index: 4, kind: input, shape index: {}]
  %s5 = inlined_call_operand.hbm [shape: bf16[128,128], index: 5, kind: input, shape index: {}]
  %s6 = inlined_call_operand.vmem [shape: f32[1,128], index: 6, kind: input, shape index: {}]
  %s7 = inlined_call_operand.hbm [shape: bf16[16,128], index: 7, kind: output, shape index: {}]
  %s8 = sld [smem:[#allocation0]]
  $region54: #{tpu_custom_call.1} parent=0
    _
  %s10 = ssub.s32 1, %s8
  %s11 = scalar_select 0, %s10, %s8
  $region1: #{tpu_custom_call.1} parent=0
    #allocation2 [shape = 'u8[28672]{0}', space=vmem, size = 0x7000, scoped, tag = 'input window, operand 0, single buffered']
    #allocation3 [shape = 's32[1]{0}', space=sflag, size = 0x4, scoped, tag = 'scoped memory for tpu_custom_call.1']
    #allocation4 [shape = 's32[1]{0}', space=sflag, size = 0x4, scoped, tag = 'scoped memory for tpu_custom_call.1']
    #allocation5 [shape = 'u8[602112]{0}', space=vmem, size = 0x93000, scoped, tag = 'input window, operand 1, single buffered']
    #allocation6 [shape = 's32[1]{0}', space=sflag, size = 0x4, scoped, tag = 'scoped memory for tpu_custom_call.1']
    #allocation7 [shape = 'u8[98304]{0}', space=vmem, size = 0x18000, scoped, tag = 'input window, operand 3, single buffered']
    #allocation8 [shape = 'u8[32768]{0}', space=vmem, size = 0x8000, scoped, tag = 'input window, operand 5, single buffered']
    #allocation9 [shape = 's32[1]{0}', space=sflag, size = 0x4, scoped, tag = 'scoped memory for tpu_custom_call.1']
    #allocation10 [shape = 'u8[4096]{0}', space=vmem, size = 0x1000, scoped, tag = 'output window, operand 0, single buffered']
    %12 = vsyncpa [#allocation3], 0
    %13 = vsyncpa [#allocation6], 0
    %14 = vsyncpa [#allocation9], 0
    %15 = vsyncpa [#allocation4], 0
    // Predicated region
    $region2: #{tpu_custom_call.1} parent=1 // pred_check
      _
    $region3: #{tpu_custom_call.1} parent=1 // pred_check_branch
      %17 = sbr.rel (0) target = $region5
    $region4: #{tpu_custom_call.1} parent=1 // pred_region
      %s19 = ssub.s32 896, 896
      %20 = vsyncadd [#allocation3], %s19
      %s21 = sshll.u32 [#allocation2], 4
      %s22 = int_to_ptr.vmem [resolvable:$true] %s21
      %27 = dma.hbm_to_vmem [thread:$0]  %s0, 896, %s22, [#allocation3], 448, 448, 28
    $region5: #{tpu_custom_call.1} parent=1 // pred_fallthru
      _
    // Predicated region
    $region6: #{tpu_custom_call.1} parent=1 // pred_check
      _
    $region7: #{tpu_custom_call.1} parent=1 // pred_check_branch
      %29 = sbr.rel (0) target = $region9
    $region8: #{tpu_custom_call.1} parent=1 // pred_region
      %s31 = ssub.s32 18816, 18816
      %32 = vsyncadd [#allocation6], %s31
      %s33 = sshll.u32 [#allocation5], 4
      %s34 = int_to_ptr.vmem [resolvable:$true] %s33
      %39 = dma.hbm_to_vmem [thread:$0]  %s1, 18816, %s34, [#allocation6], 192, 192, 12
    $region9: #{tpu_custom_call.1} parent=1 // pred_fallthru
      _
    // Predicated region
    $region10: #{tpu_custom_call.1} parent=1 // pred_check
      _
    $region11: #{tpu_custom_call.1} parent=1 // pred_check_branch
      %41 = sbr.rel (0) target = $region13
    $region12: #{tpu_custom_call.1} parent=1 // pred_region
      _
    $region13: #{tpu_custom_call.1} parent=1 // pred_fallthru
      _
    // Predicated region
    $region14: #{tpu_custom_call.1} parent=1 // pred_check
      _
    $region15: #{tpu_custom_call.1} parent=1 // pred_check_branch
      %43 = sbr.rel (0) target = $region17
    $region16: #{tpu_custom_call.1} parent=1 // pred_region
      %s45 = ssub.s32 3072, 3072
      %46 = vsyncadd [#allocation6], %s45
      %s47 = sshll.u32 [#allocation7], 4
      %s48 = int_to_ptr.vmem [resolvable:$true] %s47
      %53 = dma.hbm_to_vmem [thread:$0]  %s3, 3072, %s48, [#allocation6], 64, 64, 4
    $region17: #{tpu_custom_call.1} parent=1 // pred_fallthru
      _
    // Predicated region
    $region18: #{tpu_custom_call.1} parent=1 // pred_check
      _
    $region19: #{tpu_custom_call.1} parent=1 // pred_check_branch
      %55 = sbr.rel (0) target = $region21
    $region20: #{tpu_custom_call.1} parent=1 // pred_region
      _
    $region21: #{tpu_custom_call.1} parent=1 // pred_fallthru
      _
    // Predicated region
    $region22: #{tpu_custom_call.1} parent=1 // pred_check
      _
    $region23: #{tpu_custom_call.1} parent=1 // pred_check_branch
      %57 = sbr.rel (0) target = $region25
    $region24: #{tpu_custom_call.1} parent=1 // pred_region
      %s59 = ssub.s32 1024, 1024
      %60 = vsyncadd [#allocation9], %s59
      %s61 = sshll.u32 [#allocation8], 4
      %s62 = int_to_ptr.vmem [resolvable:$true] %s61
      %67 = dma.hbm_to_vmem [thread:$0]  %s5, 1024, %s62, [#allocation9], 64, 64, 4
    $region25: #{tpu_custom_call.1} parent=1 // pred_fallthru
      _
    // Predicated region
    $region26: #{tpu_custom_call.1} parent=1 // pred_check
      _
    $region27: #{tpu_custom_call.1} parent=1 // pred_check_branch
      %69 = sbr.rel (0) target = $region29
    $region28: #{tpu_custom_call.1} parent=1 // pred_region
      _
    $region29: #{tpu_custom_call.1} parent=1 // pred_fallthru
      _
    // Predicated region
    $region30: #{tpu_custom_call.1} parent=1 // pred_check
      _
    $region31: #{tpu_custom_call.1} parent=1 // pred_check_branch
      %71 = sbr.rel (0) target = $region33
    $region32: #{tpu_custom_call.1} parent=1 // pred_region
      %72 = dma.done [#allocation3], 896
    $region33: #{tpu_custom_call.1} parent=1 // pred_fallthru
      _
    // Predicated region
    $region34: #{tpu_custom_call.1} parent=1 // pred_check
      _
    $region35: #{tpu_custom_call.1} parent=1 // pred_check_branch
      %74 = sbr.rel (0) target = $region37
    $region36: #{tpu_custom_call.1} parent=1 // pred_region
      %75 = dma.done [#allocation6], 18816
    $region37: #{tpu_custom_call.1} parent=1 // pred_fallthru
      _
    // Predicated region
    $region38: #{tpu_custom_call.1} parent=1 // pred_check
      _
    $region39: #{tpu_custom_call.1} parent=1 // pred_check_branch
      %77 = sbr.rel (0) target = $region41
    $region40: #{tpu_custom_call.1} parent=1 // pred_region
      %78 = dma.done [#allocation6], 3072
    $region41: #{tpu_custom_call.1} parent=1 // pred_fallthru
      _
    // Predicated region
    $region42: #{tpu_custom_call.1} parent=1 // pred_check
      _
    $region43: #{tpu_custom_call.1} parent=1 // pred_check_branch
      %80 = sbr.rel (0) target = $region45
    $region44: #{tpu_custom_call.1} parent=1 // pred_region
      %81 = dma.done [#allocation9], 1024
    $region45: #{tpu_custom_call.1} parent=1 // pred_fallthru
      _
    %v83 = vld [vmem:[#allocation2] sm:$0xff]
    %v84 = vld [vmem:[#allocation2 + $0x8] sm:$0xff]
    %v85 = vld [vmem:[#allocation2 + $0x10] sm:$0xff]
    %v86 = vld [vmem:[#allocation2 + $0x18] sm:$0xf]
    %v87 = vld [vmem:[#allocation2 + $0x1c] sm:$0xff]
    %v88 = vld [vmem:[#allocation2 + $0x24] sm:$0xff]
    %v89 = vld [vmem:[#allocation2 + $0x2c] sm:$0xff]
    %v90 = vld [vmem:[#allocation2 + $0x34] sm:$0xf]
    %v91 = vld [vmem:[#allocation5] sm:$0xff]
    %v92 = vld [vmem:[#allocation5 + $0x8] sm:$0xf]
    %v93 = vld [vmem:[#allocation5 + $0xc] sm:$0xff]
    %v94 = vld [vmem:[#allocation5 + $0x14] sm:$0xf]
    %v95 = vld [vmem:[#allocation5 + $0x18] sm:$0xff]
    %v96 = vld [vmem:[#allocation5 + $0x20] sm:$0xf]
    %v97 = vld [vmem:[#allocation5 + $0x24] sm:$0xff]
    %v98 = vld [vmem:[#allocation5 + $0x2c] sm:$0xf]
    %v99 = vld [vmem:[#allocation5 + $0x30] sm:$0xff]
    %v100 = vld [vmem:[#allocation5 + $0x38] sm:$0xf]
    %v101 = vld [vmem:[#allocation5 + $0x3c] sm:$0xff]
    %v102 = vld [vmem:[#allocation5 + $0x44] sm:$0xf]
    %v103 = vld [vmem:[#allocation5 + $0x48] sm:$0xff]
    %v104 = vld [vmem:[#allocation5 + $0x50] sm:$0xf]
    %v105 = vld [vmem:[#allocation5 + $0x54] sm:$0xff]
    %v106 = vld [vmem:[#allocation5 + $0x5c] sm:$0xf]
    %v107 = vld [vmem:[#allocation5 + $0x60] sm:$0xff]
    %v108 = vld [vmem:[#allocation5 + $0x68] sm:$0xf]
    %v109 = vld [vmem:[#allocation5 + $0x6c] sm:$0xff]
    %v110 = vld [vmem:[#allocation5 + $0x74] sm:$0xf]
    %v111 = vld [vmem:[#allocation5 + $0x78] sm:$0xff]
    %v112 = vld [vmem:[#allocation5 + $0x80] sm:$0xf]
    %v113 = vld [vmem:[#allocation5 + $0x84] sm:$0xff]
    %v114 = vld [vmem:[#allocation5 + $0x8c] sm:$0xf]
    %v115 = vld [vmem:[#allocation5 + $0x90] sm:$0xff]
    %v116 = vld [vmem:[#allocation5 + $0x98] sm:$0xf]
    %v117 = vld [vmem:[#allocation5 + $0x9c] sm:$0xff]
    %v118 = vld [vmem:[#allocation5 + $0xa4] sm:$0xf]
    %v119 = vld [vmem:[#allocation5 + $0xa8] sm:$0xff]
    %v120 = vld [vmem:[#allocation5 + $0xb0] sm:$0xf]
    %v121 = vld [vmem:[#allocation5 + $0xb4] sm:$0xff]
    %v122 = vld [vmem:[#allocation5 + $0xbc] sm:$0xf]
    %v123 = vld [vmem:[#allocation5 + $0xc0] sm:$0xff]
    %v124 = vld [vmem:[#allocation5 + $0xc8] sm:$0xf]
    %v125 = vld [vmem:[#allocation5 + $0xcc] sm:$0xff]
    %v126 = vld [vmem:[#allocation5 + $0xd4] sm:$0xf]
    %v127 = vld [vmem:[#allocation5 + $0xd8] sm:$0xff]
    %v128 = vld [vmem:[#allocation5 + $0xe0] sm:$0xf]
    %v129 = vld [vmem:[#allocation5 + $0xe4] sm:$0xff]
    %v130 = vld [vmem:[#allocation5 + $0xec] sm:$0xf]
    %v131 = vld [vmem:[#allocation5 + $0xf0] sm:$0xff]
    %v132 = vld [vmem:[#allocation5 + $0xf8] sm:$0xf]
    %v133 = vld [vmem:[#allocation5 + $0xfc] sm:$0xff]
    %v134 = vld [vmem:[#allocation5 + $0x104] sm:$0xf]
    %v135 = vld [vmem:[#allocation5 + $0x108] sm:$0xff]
    %v136 = vld [vmem:[#allocation5 + $0x110] sm:$0xf]
    %v137 = vld [vmem:[#allocation5 + $0x114] sm:$0xff]
    %v138 = vld [vmem:[#allocation5 + $0x11c] sm:$0xf]
    %v139 = vld [vmem:[#allocation5 + $0x120] sm:$0xff]
    %v140 = vld [vmem:[#allocation5 + $0x128] sm:$0xf]
    %v141 = vld [vmem:[#allocation5 + $0x12c] sm:$0xff]
    %v142 = vld [vmem:[#allocation5 + $0x134] sm:$0xf]
    %v143 = vld [vmem:[#allocation5 + $0x138] sm:$0xff]
    %v144 = vld [vmem:[#allocation5 + $0x140] sm:$0xf]
    %v145 = vld [vmem:[#allocation5 + $0x144] sm:$0xff]
    %v146 = vld [vmem:[#allocation5 + $0x14c] sm:$0xf]
    %v147 = vld [vmem:[#allocation5 + $0x150] sm:$0xff]
    %v148 = vld [vmem:[#allocation5 + $0x158] sm:$0xf]
    %v149 = vld [vmem:[#allocation5 + $0x15c] sm:$0xff]
    %v150 = vld [vmem:[#allocation5 + $0x164] sm:$0xf]
    %v151 = vld [vmem:[#allocation5 + $0x168] sm:$0xff]
    %v152 = vld [vmem:[#allocation5 + $0x170] sm:$0xf]
    %v153 = vld [vmem:[#allocation5 + $0x174] sm:$0xff]
    %v154 = vld [vmem:[#allocation5 + $0x17c] sm:$0xf]
    %v155 = vld [vmem:[#allocation5 + $0x180] sm:$0xff]
    %v156 = vld [vmem:[#allocation5 + $0x188] sm:$0xf]
    %v157 = vld [vmem:[#allocation5 + $0x18c] sm:$0xff]
    %v158 = vld [vmem:[#allocation5 + $0x194] sm:$0xf]
    %v159 = vld [vmem:[#allocation5 + $0x198] sm:$0xff]
    %v160 = vld [vmem:[#allocation5 + $0x1a0] sm:$0xf]
    %v161 = vld [vmem:[#allocation5 + $0x1a4] sm:$0xff]
    %v162 = vld [vmem:[#allocation5 + $0x1ac] sm:$0xf]
    %v163 = vld [vmem:[#allocation5 + $0x1b0] sm:$0xff]
    %v164 = vld [vmem:[#allocation5 + $0x1b8] sm:$0xf]
    %v165 = vld [vmem:[#allocation5 + $0x1bc] sm:$0xff]
    %v166 = vld [vmem:[#allocation5 + $0x1c4] sm:$0xf]
    %v167 = vld [vmem:[#allocation5 + $0x1c8] sm:$0xff]
    %v168 = vld [vmem:[#allocation5 + $0x1d0] sm:$0xf]
    %v169 = vld [vmem:[#allocation5 + $0x1d4] sm:$0xff]
    %v170 = vld [vmem:[#allocation5 + $0x1dc] sm:$0xf]
    %v171 = vld [vmem:[#allocation5 + $0x1e0] sm:$0xff]
    %v172 = vld [vmem:[#allocation5 + $0x1e8] sm:$0xf]
    %v173 = vld [vmem:[#allocation5 + $0x1ec] sm:$0xff]
    %v174 = vld [vmem:[#allocation5 + $0x1f4] sm:$0xf]
    %v175 = vld [vmem:[#allocation5 + $0x1f8] sm:$0xff]
    %v176 = vld [vmem:[#allocation5 + $0x200] sm:$0xf]
    %v177 = vld [vmem:[#allocation5 + $0x204] sm:$0xff]
    %v178 = vld [vmem:[#allocation5 + $0x20c] sm:$0xf]
    %v179 = vld [vmem:[#allocation5 + $0x210] sm:$0xff]
    %v180 = vld [vmem:[#allocation5 + $0x218] sm:$0xf]
    %v181 = vld [vmem:[#allocation5 + $0x21c] sm:$0xff]
    %v182 = vld [vmem:[#allocation5 + $0x224] sm:$0xf]
    %v183 = vld [vmem:[#allocation5 + $0x228] sm:$0xff]
    %v184 = vld [vmem:[#allocation5 + $0x230] sm:$0xf]
    %v185 = vld [vmem:[#allocation5 + $0x234] sm:$0xff]
    %v186 = vld [vmem:[#allocation5 + $0x23c] sm:$0xf]
    %v187 = vld [vmem:[#allocation5 + $0x240] sm:$0xff]
    %v188 = vld [vmem:[#allocation5 + $0x248] sm:$0xf]
    %v189 = vld [vmem:[#allocation5 + $0x24c] sm:$0xff]
    %v190 = vld [vmem:[#allocation5 + $0x254] sm:$0xf]
    %v191 = vld [vmem:[#allocation5 + $0x258] sm:$0xff]
    %v192 = vld [vmem:[#allocation5 + $0x260] sm:$0xf]
    %v193 = vld [vmem:[#allocation5 + $0x264] sm:$0xff]
    %v194 = vld [vmem:[#allocation5 + $0x26c] sm:$0xf]
    %v195 = vld [vmem:[#allocation5 + $0x270] sm:$0xff]
    %v196 = vld [vmem:[#allocation5 + $0x278] sm:$0xf]
    %v197 = vld [vmem:[#allocation5 + $0x27c] sm:$0xff]
    %v198 = vld [vmem:[#allocation5 + $0x284] sm:$0xf]
    %v199 = vld [vmem:[#allocation5 + $0x288] sm:$0xff]
    %v200 = vld [vmem:[#allocation5 + $0x290] sm:$0xf]
    %v201 = vld [vmem:[#allocation5 + $0x294] sm:$0xff]
    %v202 = vld [vmem:[#allocation5 + $0x29c] sm:$0xf]
    %v203 = vld [vmem:[#allocation5 + $0x2a0] sm:$0xff]
    %v204 = vld [vmem:[#allocation5 + $0x2a8] sm:$0xf]
    %v205 = vld [vmem:[#allocation5 + $0x2ac] sm:$0xff]
    %v206 = vld [vmem:[#allocation5 + $0x2b4] sm:$0xf]
    %v207 = vld [vmem:[#allocation5 + $0x2b8] sm:$0xff]
    %v208 = vld [vmem:[#allocation5 + $0x2c0] sm:$0xf]
    %v209 = vld [vmem:[#allocation5 + $0x2c4] sm:$0xff]
    %v210 = vld [vmem:[#allocation5 + $0x2cc] sm:$0xf]
    %v211 = vld [vmem:[#allocation5 + $0x2d0] sm:$0xff]
    %v212 = vld [vmem:[#allocation5 + $0x2d8] sm:$0xf]
    %v213 = vld [vmem:[#allocation5 + $0x2dc] sm:$0xff]
    %v214 = vld [vmem:[#allocation5 + $0x2e4] sm:$0xf]
    %v215 = vld [vmem:[#allocation5 + $0x2e8] sm:$0xff]
    %v216 = vld [vmem:[#allocation5 + $0x2f0] sm:$0xf]
    %v217 = vld [vmem:[#allocation5 + $0x2f4] sm:$0xff]
    %v218 = vld [vmem:[#allocation5 + $0x2fc] sm:$0xf]
    %v219 = vld [vmem:[#allocation5 + $0x300] sm:$0xff]
    %v220 = vld [vmem:[#allocation5 + $0x308] sm:$0xf]
    %v221 = vld [vmem:[#allocation5 + $0x30c] sm:$0xff]
    %v222 = vld [vmem:[#allocation5 + $0x314] sm:$0xf]
    %v223 = vld [vmem:[#allocation5 + $0x318] sm:$0xff]
    %v224 = vld [vmem:[#allocation5 + $0x320] sm:$0xf]
    %v225 = vld [vmem:[#allocation5 + $0x324] sm:$0xff]
    %v226 = vld [vmem:[#allocation5 + $0x32c] sm:$0xf]
    %v227 = vld [vmem:[#allocation5 + $0x330] sm:$0xff]
    %v228 = vld [vmem:[#allocation5 + $0x338] sm:$0xf]
    %v229 = vld [vmem:[#allocation5 + $0x33c] sm:$0xff]
    %v230 = vld [vmem:[#allocation5 + $0x344] sm:$0xf]
    %v231 = vld [vmem:[#allocation5 + $0x348] sm:$0xff]
    %v232 = vld [vmem:[#allocation5 + $0x350] sm:$0xf]
    %v233 = vld [vmem:[#allocation5 + $0x354] sm:$0xff]
    %v234 = vld [vmem:[#allocation5 + $0x35c] sm:$0xf]
    %v235 = vld [vmem:[#allocation5 + $0x360] sm:$0xff]
    %v236 = vld [vmem:[#allocation5 + $0x368] sm:$0xf]
    %v237 = vld [vmem:[#allocation5 + $0x36c] sm:$0xff]
    %v238 = vld [vmem:[#allocation5 + $0x374] sm:$0xf]
    %v239 = vld [vmem:[#allocation5 + $0x378] sm:$0xff]
    %v240 = vld [vmem:[#allocation5 + $0x380] sm:$0xf]
    %v241 = vld [vmem:[#allocation5 + $0x384] sm:$0xff]
    %v242 = vld [vmem:[#allocation5 + $0x38c] sm:$0xf]
    %v243 = vld [vmem:[#allocation5 + $0x390] sm:$0xff]
    %v244 = vld [vmem:[#allocation5 + $0x398] sm:$0xf]
    %v245 = vld [vmem:[#allocation5 + $0x39c] sm:$0xff]
    %v246 = vld [vmem:[#allocation5 + $0x3a4] sm:$0xf]
    %v247 = vld [vmem:[#allocation5 + $0x3a8] sm:$0xff]
    %v248 = vld [vmem:[#allocation5 + $0x3b0] sm:$0xf]
    %v249 = vld [vmem:[#allocation5 + $0x3b4] sm:$0xff]
    %v250 = vld [vmem:[#allocation5 + $0x3bc] sm:$0xf]
    %v251 = vld [vmem:[#allocation5 + $0x3c0] sm:$0xff]
    %v252 = vld [vmem:[#allocation5 + $0x3c8] sm:$0xf]
    %v253 = vld [vmem:[#allocation5 + $0x3cc] sm:$0xff]
    %v254 = vld [vmem:[#allocation5 + $0x3d4] sm:$0xf]
    %v255 = vld [vmem:[#allocation5 + $0x3d8] sm:$0xff]
    %v256 = vld [vmem:[#allocation5 + $0x3e0] sm:$0xf]
    %v257 = vld [vmem:[#allocation5 + $0x3e4] sm:$0xff]
    %v258 = vld [vmem:[#allocation5 + $0x3ec] sm:$0xf]
    %v259 = vld [vmem:[#allocation5 + $0x3f0] sm:$0xff]
    %v260 = vld [vmem:[#allocation5 + $0x3f8] sm:$0xf]
    %v261 = vld [vmem:[#allocation5 + $0x3fc] sm:$0xff]
    %v262 = vld [vmem:[#allocation5 + $0x404] sm:$0xf]
    %v263 = vld [vmem:[#allocation5 + $0x408] sm:$0xff]
    %v264 = vld [vmem:[#allocation5 + $0x410] sm:$0xf]
    %v265 = vld [vmem:[#allocation5 + $0x414] sm:$0xff]
    %v266 = vld [vmem:[#allocation5 + $0x41c] sm:$0xf]
    %v267 = vld [vmem:[#allocation5 + $0x420] sm:$0xff]
    %v268 = vld [vmem:[#allocation5 + $0x428] sm:$0xf]
    %v269 = vld [vmem:[#allocation5 + $0x42c] sm:$0xff]
    %v270 = vld [vmem:[#allocation5 + $0x434] sm:$0xf]
    %v271 = vld [vmem:[#allocation5 + $0x438] sm:$0xff]
    %v272 = vld [vmem:[#allocation5 + $0x440] sm:$0xf]
    %v273 = vld [vmem:[#allocation5 + $0x444] sm:$0xff]
    %v274 = vld [vmem:[#allocation5 + $0x44c] sm:$0xf]
    %v275 = vld [vmem:[#allocation5 + $0x450] sm:$0xff]
    %v276 = vld [vmem:[#allocation5 + $0x458] sm:$0xf]
    %v277 = vld [vmem:[#allocation5 + $0x45c] sm:$0xff]
    %v278 = vld [vmem:[#allocation5 + $0x464] sm:$0xf]
    %v279 = vld [vmem:[#allocation5 + $0x468] sm:$0xff]
    %v280 = vld [vmem:[#allocation5 + $0x470] sm:$0xf]
    %v281 = vld [vmem:[#allocation5 + $0x474] sm:$0xff]
    %v282 = vld [vmem:[#allocation5 + $0x47c] sm:$0xf]
    %v283 = vld [vmem:[#allocation5 + $0x480] sm:$0xff]
    %v284 = vld [vmem:[#allocation5 + $0x488] sm:$0xf]
    %v285 = vld [vmem:[#allocation5 + $0x48c] sm:$0xff]
    %v286 = vld [vmem:[#allocation5 + $0x494] sm:$0xf]
    %v287 = vld [vmem:[%s2] sm:$0x7]
    %v289 = vlaneseq
    %v290 = vshrl.u32 %v289, 7
    %v291 = vsub.s32 0, %v290
    %v292 = vrot.slane %v287, %v291
    %v293 = vlaneseq
    %v294 = vshrl.u32 %v293, 7
    %v295 = vsub.s32 1, %v294
    %v296 = vrot.slane %v287, %v295
    %v297 = vlaneseq
    %v298 = vshrl.u32 %v297, 7
    %v299 = vsub.s32 2, %v298
    %v300 = vrot.slane %v287, %v299
    %v312 = vunpack.c.l.b16 %v83
    %v313 = vunpack.c.h.b16 %v83
    %v314 = vunpack.c.l.b16 %v84
    %v315 = vunpack.c.h.b16 %v84
    %v316 = vunpack.c.l.b16 %v85
    %v317 = vunpack.c.h.b16 %v85
    %v318 = vunpack.c.l.b16 %v86
    %v319 = vunpack.c.l.b16 %v87
    %v320 = vunpack.c.h.b16 %v87
    %v321 = vunpack.c.l.b16 %v88
    %v322 = vunpack.c.h.b16 %v88
    %v323 = vunpack.c.l.b16 %v89
    %v324 = vunpack.c.h.b16 %v89
    %v325 = vunpack.c.l.b16 %v90
    %v326 = vpack.c.b16 %v319, %v312
    %v327 = vpack.c.b16 %v320, %v313
    %v328 = vpack.c.b16 %v321, %v314
    %v329 = vpack.c.b16 %v322, %v315
    %v330 = vpack.c.b16 %v323, %v316
    %v331 = vpack.c.b16 %v324, %v317
    %v332 = vpack.c.b16 %v325, %v318
    %v535 = vunpack.c.l.b16 %v91
    %v536 = vunpack.c.h.b16 %v91
    %v537 = vunpack.c.l.b16 %v92
    %v538 = vunpack.c.l.b16 %v93
    %v539 = vunpack.c.h.b16 %v93
    %v540 = vunpack.c.l.b16 %v94
    %v541 = vunpack.c.l.b16 %v95
    %v542 = vunpack.c.h.b16 %v95
    %v543 = vunpack.c.l.b16 %v96
    %v544 = vunpack.c.l.b16 %v97
    %v545 = vunpack.c.h.b16 %v97
    %v546 = vunpack.c.l.b16 %v98
    %v547 = vunpack.c.l.b16 %v99
    %v548 = vunpack.c.h.b16 %v99
    %v549 = vunpack.c.l.b16 %v100
    %v550 = vunpack.c.l.b16 %v101
    %v551 = vunpack.c.h.b16 %v101
    %v552 = vunpack.c.l.b16 %v102
    %v553 = vunpack.c.l.b16 %v103
    %v554 = vunpack.c.h.b16 %v103
    %v555 = vunpack.c.l.b16 %v104
    %v556 = vunpack.c.l.b16 %v105
    %v557 = vunpack.c.h.b16 %v105
    %v558 = vunpack.c.l.b16 %v106
    %v559 = vunpack.c.l.b16 %v107
    %v560 = vunpack.c.h.b16 %v107
    %v561 = vunpack.c.l.b16 %v108
    %v562 = vunpack.c.l.b16 %v109
    %v563 = vunpack.c.h.b16 %v109
    %v564 = vunpack.c.l.b16 %v110
    %v565 = vunpack.c.l.b16 %v111
    %v566 = vunpack.c.h.b16 %v111
    %v567 = vunpack.c.l.b16 %v112
    %v568 = vunpack.c.l.b16 %v113
    %v569 = vunpack.c.h.b16 %v113
    %v570 = vunpack.c.l.b16 %v114
    %v571 = vunpack.c.l.b16 %v115
    %v572 = vunpack.c.h.b16 %v115
    %v573 = vunpack.c.l.b16 %v116
    %v574 = vunpack.c.l.b16 %v117
    %v575 = vunpack.c.h.b16 %v117
    %v576 = vunpack.c.l.b16 %v118
    %v577 = vunpack.c.l.b16 %v119
    %v578 = vunpack.c.h.b16 %v119
    %v579 = vunpack.c.l.b16 %v120
    %v580 = vunpack.c.l.b16 %v121
    %v581 = vunpack.c.h.b16 %v121
    %v582 = vunpack.c.l.b16 %v122
    %v583 = vunpack.c.l.b16 %v123
    %v584 = vunpack.c.h.b16 %v123
    %v585 = vunpack.c.l.b16 %v124
    %v586 = vunpack.c.l.b16 %v125
    %v587 = vunpack.c.h.b16 %v125
    %v588 = vunpack.c.l.b16 %v126
    %v589 = vunpack.c.l.b16 %v127
    %v590 = vunpack.c.h.b16 %v127
    %v591 = vunpack.c.l.b16 %v128
    %v592 = vunpack.c.l.b16 %v129
    %v593 = vunpack.c.h.b16 %v129
    %v594 = vunpack.c.l.b16 %v130
    %v595 = vunpack.c.l.b16 %v131
    %v596 = vunpack.c.h.b16 %v131
    %v597 = vunpack.c.l.b16 %v132
    %v598 = vunpack.c.l.b16 %v133
    %v599 = vunpack.c.h.b16 %v133
    %v600 = vunpack.c.l.b16 %v134
    %v601 = vunpack.c.l.b16 %v135
    %v602 = vunpack.c.h.b16 %v135
    %v603 = vunpack.c.l.b16 %v136
    %v604 = vunpack.c.l.b16 %v137
    %v605 = vunpack.c.h.b16 %v137
    %v606 = vunpack.c.l.b16 %v138
    %v607 = vunpack.c.l.b16 %v139
    %v608 = vunpack.c.h.b16 %v139
    %v609 = vunpack.c.l.b16 %v140
    %v610 = vunpack.c.l.b16 %v141
    %v611 = vunpack.c.h.b16 %v141
    %v612 = vunpack.c.l.b16 %v142
    %v613 = vunpack.c.l.b16 %v143
    %v614 = vunpack.c.h.b16 %v143
    %v615 = vunpack.c.l.b16 %v144
    %v616 = vunpack.c.l.b16 %v145
    %v617 = vunpack.c.h.b16 %v145
    %v618 = vunpack.c.l.b16 %v146
    %v619 = vunpack.c.l.b16 %v147
    %v620 = vunpack.c.h.b16 %v147
    %v621 = vunpack.c.l.b16 %v148
    %v622 = vunpack.c.l.b16 %v149
    %v623 = vunpack.c.h.b16 %v149
    %v624 = vunpack.c.l.b16 %v150
    %v625 = vunpack.c.l.b16 %v151
    %v626 = vunpack.c.h.b16 %v151
    %v627 = vunpack.c.l.b16 %v152
    %v628 = vunpack.c.l.b16 %v153
    %v629 = vunpack.c.h.b16 %v153
    %v630 = vunpack.c.l.b16 %v154
    %v631 = vunpack.c.l.b16 %v155
    %v632 = vunpack.c.h.b16 %v155
    %v633 = vunpack.c.l.b16 %v156
    %v634 = vunpack.c.l.b16 %v157
    %v635 = vunpack.c.h.b16 %v157
    %v636 = vunpack.c.l.b16 %v158
    %v637 = vunpack.c.l.b16 %v159
    %v638 = vunpack.c.h.b16 %v159
    %v639 = vunpack.c.l.b16 %v160
    %v640 = vunpack.c.l.b16 %v161
    %v641 = vunpack.c.h.b16 %v161
    %v642 = vunpack.c.l.b16 %v162
    %v643 = vunpack.c.l.b16 %v163
    %v644 = vunpack.c.h.b16 %v163
    %v645 = vunpack.c.l.b16 %v164
    %v646 = vunpack.c.l.b16 %v165
    %v647 = vunpack.c.h.b16 %v165
    %v648 = vunpack.c.l.b16 %v166
    %v649 = vunpack.c.l.b16 %v167
    %v650 = vunpack.c.h.b16 %v167
    %v651 = vunpack.c.l.b16 %v168
    %v652 = vunpack.c.l.b16 %v169
    %v653 = vunpack.c.h.b16 %v169
    %v654 = vunpack.c.l.b16 %v170
    %v655 = vunpack.c.l.b16 %v171
    %v656 = vunpack.c.h.b16 %v171
    %v657 = vunpack.c.l.b16 %v172
    %v658 = vunpack.c.l.b16 %v173
    %v659 = vunpack.c.h.b16 %v173
    %v660 = vunpack.c.l.b16 %v174
    %v661 = vunpack.c.l.b16 %v175
    %v662 = vunpack.c.h.b16 %v175
    %v663 = vunpack.c.l.b16 %v176
    %v664 = vunpack.c.l.b16 %v177
    %v665 = vunpack.c.h.b16 %v177
    %v666 = vunpack.c.l.b16 %v178
    %v667 = vunpack.c.l.b16 %v179
    %v668 = vunpack.c.h.b16 %v179
    %v669 = vunpack.c.l.b16 %v180
    %v670 = vunpack.c.l.b16 %v181
    %v671 = vunpack.c.h.b16 %v181
    %v672 = vunpack.c.l.b16 %v182
    %v673 = vunpack.c.l.b16 %v183
    %v674 = vunpack.c.h.b16 %v183
    %v675 = vunpack.c.l.b16 %v184
    %v676 = vunpack.c.l.b16 %v185
    %v677 = vunpack.c.h.b16 %v185
    %v678 = vunpack.c.l.b16 %v186
    %v679 = vunpack.c.l.b16 %v187
    %v680 = vunpack.c.h.b16 %v187
    %v681 = vunpack.c.l.b16 %v188
    %v682 = vunpack.c.l.b16 %v189
    %v683 = vunpack.c.h.b16 %v189
    %v684 = vunpack.c.l.b16 %v190
    %v685 = vunpack.c.l.b16 %v191
    %v686 = vunpack.c.h.b16 %v191
    %v687 = vunpack.c.l.b16 %v192
    %v688 = vunpack.c.l.b16 %v193
    %v689 = vunpack.c.h.b16 %v193
    %v690 = vunpack.c.l.b16 %v194
    %v691 = vunpack.c.l.b16 %v195
    %v692 = vunpack.c.h.b16 %v195
    %v693 = vunpack.c.l.b16 %v196
    %v694 = vunpack.c.l.b16 %v197
    %v695 = vunpack.c.h.b16 %v197
    %v696 = vunpack.c.l.b16 %v198
    %v697 = vunpack.c.l.b16 %v199
    %v698 = vunpack.c.h.b16 %v199
    %v699 = vunpack.c.l.b16 %v200
    %v700 = vunpack.c.l.b16 %v201
    %v701 = vunpack.c.h.b16 %v201
    %v702 = vunpack.c.l.b16 %v202
    %v703 = vunpack.c.l.b16 %v203
    %v704 = vunpack.c.h.b16 %v203
    %v705 = vunpack.c.l.b16 %v204
    %v706 = vunpack.c.l.b16 %v205
    %v707 = vunpack.c.h.b16 %v205
    %v708 = vunpack.c.l.b16 %v206
    %v709 = vunpack.c.l.b16 %v207
    %v710 = vunpack.c.h.b16 %v207
    %v711 = vunpack.c.l.b16 %v208
    %v712 = vunpack.c.l.b16 %v209
    %v713 = vunpack.c.h.b16 %v209
    %v714 = vunpack.c.l.b16 %v210
    %v715 = vunpack.c.l.b16 %v211
    %v716 = vunpack.c.h.b16 %v211
    %v717 = vunpack.c.l.b16 %v212
    %v718 = vunpack.c.l.b16 %v213
    %v719 = vunpack.c.h.b16 %v213
    %v720 = vunpack.c.l.b16 %v214
    %v721 = vunpack.c.l.b16 %v215
    %v722 = vunpack.c.h.b16 %v215
    %v723 = vunpack.c.l.b16 %v216
    %v724 = vunpack.c.l.b16 %v217
    %v725 = vunpack.c.h.b16 %v217
    %v726 = vunpack.c.l.b16 %v218
    %v727 = vunpack.c.l.b16 %v219
    %v728 = vunpack.c.h.b16 %v219
    %v729 = vunpack.c.l.b16 %v220
    %v730 = vunpack.c.l.b16 %v221
    %v731 = vunpack.c.h.b16 %v221
    %v732 = vunpack.c.l.b16 %v222
    %v733 = vunpack.c.l.b16 %v223
    %v734 = vunpack.c.h.b16 %v223
    %v735 = vunpack.c.l.b16 %v224
    %v736 = vunpack.c.l.b16 %v225
    %v737 = vunpack.c.h.b16 %v225
    %v738 = vunpack.c.l.b16 %v226
    %v739 = vunpack.c.l.b16 %v227
    %v740 = vunpack.c.h.b16 %v227
    %v741 = vunpack.c.l.b16 %v228
    %v742 = vunpack.c.l.b16 %v229
    %v743 = vunpack.c.h.b16 %v229
    %v744 = vunpack.c.l.b16 %v230
    %v745 = vunpack.c.l.b16 %v231
    %v746 = vunpack.c.h.b16 %v231
    %v747 = vunpack.c.l.b16 %v232
    %v748 = vunpack.c.l.b16 %v233
    %v749 = vunpack.c.h.b16 %v233
    %v750 = vunpack.c.l.b16 %v234
    %v751 = vunpack.c.l.b16 %v235
    %v752 = vunpack.c.h.b16 %v235
    %v753 = vunpack.c.l.b16 %v236
    %v754 = vunpack.c.l.b16 %v237
    %v755 = vunpack.c.h.b16 %v237
    %v756 = vunpack.c.l.b16 %v238
    %v757 = vunpack.c.l.b16 %v239
    %v758 = vunpack.c.h.b16 %v239
    %v759 = vunpack.c.l.b16 %v240
    %v760 = vunpack.c.l.b16 %v241
    %v761 = vunpack.c.h.b16 %v241
    %v762 = vunpack.c.l.b16 %v242
    %v763 = vunpack.c.l.b16 %v243
    %v764 = vunpack.c.h.b16 %v243
    %v765 = vunpack.c.l.b16 %v244
    %v766 = vunpack.c.l.b16 %v245
    %v767 = vunpack.c.h.b16 %v245
    %v768 = vunpack.c.l.b16 %v246
    %v769 = vunpack.c.l.b16 %v247
    %v770 = vunpack.c.h.b16 %v247
    %v771 = vunpack.c.l.b16 %v248
    %v772 = vunpack.c.l.b16 %v249
    %v773 = vunpack.c.h.b16 %v249
    %v774 = vunpack.c.l.b16 %v250
    %v775 = vunpack.c.l.b16 %v251
    %v776 = vunpack.c.h.b16 %v251
    %v777 = vunpack.c.l.b16 %v252
    %v778 = vunpack.c.l.b16 %v253
    %v779 = vunpack.c.h.b16 %v253
    %v780 = vunpack.c.l.b16 %v254
    %v781 = vunpack.c.l.b16 %v255
    %v782 = vunpack.c.h.b16 %v255
    %v783 = vunpack.c.l.b16 %v256
    %v784 = vunpack.c.l.b16 %v257
    %v785 = vunpack.c.h.b16 %v257
    %v786 = vunpack.c.l.b16 %v258
    %v787 = vunpack.c.l.b16 %v259
    %v788 = vunpack.c.h.b16 %v259
    %v789 = vunpack.c.l.b16 %v260
    %v790 = vunpack.c.l.b16 %v261
    %v791 = vunpack.c.h.b16 %v261
    %v792 = vunpack.c.l.b16 %v262
    %v793 = vunpack.c.l.b16 %v263
    %v794 = vunpack.c.h.b16 %v263
    %v795 = vunpack.c.l.b16 %v264
    %v796 = vunpack.c.l.b16 %v265
    %v797 = vunpack.c.h.b16 %v265
    %v798 = vunpack.c.l.b16 %v266
    %v799 = vunpack.c.l.b16 %v267
    %v800 = vunpack.c.h.b16 %v267
    %v801 = vunpack.c.l.b16 %v268
    %v802 = vunpack.c.l.b16 %v269
    %v803 = vunpack.c.h.b16 %v269
    %v804 = vunpack.c.l.b16 %v270
    %v805 = vunpack.c.l.b16 %v271
    %v806 = vunpack.c.h.b16 %v271
    %v807 = vunpack.c.l.b16 %v272
    %v808 = vunpack.c.l.b16 %v273
    %v809 = vunpack.c.h.b16 %v273
    %v810 = vunpack.c.l.b16 %v274
    %v811 = vunpack.c.l.b16 %v275
    %v812 = vunpack.c.h.b16 %v275
    %v813 = vunpack.c.l.b16 %v276
    %v814 = vunpack.c.l.b16 %v277
    %v815 = vunpack.c.h.b16 %v277
    %v816 = vunpack.c.l.b16 %v278
    %v817 = vunpack.c.l.b16 %v279
    %v818 = vunpack.c.h.b16 %v279
    %v819 = vunpack.c.l.b16 %v280
    %v820 = vunpack.c.l.b16 %v281
    %v821 = vunpack.c.h.b16 %v281
    %v822 = vunpack.c.l.b16 %v282
    %v823 = vunpack.c.l.b16 %v283
    %v824 = vunpack.c.h.b16 %v283
    %v825 = vunpack.c.l.b16 %v284
    %v826 = vunpack.c.l.b16 %v285
    %v827 = vunpack.c.h.b16 %v285
    %v828 = vunpack.c.l.b16 %v286
    %v829 = vpack.c.b16 %v538, %v535
    %v830 = vpack.c.b16 %v539, %v536
    %v831 = vpack.c.b16 %v540, %v537
    %v832 = vpack.c.b16 %v544, %v541
    %v833 = vpack.c.b16 %v545, %v542
    %v834 = vpack.c.b16 %v546, %v543
    %v835 = vpack.c.b16 %v550, %v547
    %v836 = vpack.c.b16 %v551, %v548
    %v837 = vpack.c.b16 %v552, %v549
    %v838 = vpack.c.b16 %v556, %v553
    %v839 = vpack.c.b16 %v557, %v554
    %v840 = vpack.c.b16 %v558, %v555
    %v841 = vpack.c.b16 %v562, %v559
    %v842 = vpack.c.b16 %v563, %v560
    %v843 = vpack.c.b16 %v564, %v561
    %v844 = vpack.c.b16 %v568, %v565
    %v845 = vpack.c.b16 %v569, %v566
    %v846 = vpack.c.b16 %v570, %v567
    %v847 = vpack.c.b16 %v574, %v571
    %v848 = vpack.c.b16 %v575, %v572
    %v849 = vpack.c.b16 %v576, %v573
    %v850 = vpack.c.b16 %v580, %v577
    %v851 = vpack.c.b16 %v581, %v578
    %v852 = vpack.c.b16 %v582, %v579
    %v853 = vpack.c.b16 %v586, %v583
    %v854 = vpack.c.b16 %v587, %v584
    %v855 = vpack.c.b16 %v588, %v585
    %v856 = vpack.c.b16 %v592, %v589
    %v857 = vpack.c.b16 %v593, %v590
    %v858 = vpack.c.b16 %v594, %v591
    %v859 = vpack.c.b16 %v598, %v595
    %v860 = vpack.c.b16 %v599, %v596
    %v861 = vpack.c.b16 %v600, %v597
    %v862 = vpack.c.b16 %v604, %v601
    %v863 = vpack.c.b16 %v605, %v602
    %v864 = vpack.c.b16 %v606, %v603
    %v865 = vpack.c.b16 %v610, %v607
    %v866 = vpack.c.b16 %v611, %v608
    %v867 = vpack.c.b16 %v612, %v609
    %v868 = vpack.c.b16 %v616, %v613
    %v869 = vpack.c.b16 %v617, %v614
    %v870 = vpack.c.b16 %v618, %v615
    %v871 = vpack.c.b16 %v622, %v619
    %v872 = vpack.c.b16 %v623, %v620
    %v873 = vpack.c.b16 %v624, %v621
    %v874 = vpack.c.b16 %v628, %v625
    %v875 = vpack.c.b16 %v629, %v626
    %v876 = vpack.c.b16 %v630, %v627
    %v877 = vpack.c.b16 %v634, %v631
    %v878 = vpack.c.b16 %v635, %v632
    %v879 = vpack.c.b16 %v636, %v633
    %v880 = vpack.c.b16 %v640, %v637
    %v881 = vpack.c.b16 %v641, %v638
    %v882 = vpack.c.b16 %v642, %v639
    %v883 = vpack.c.b16 %v646, %v643
    %v884 = vpack.c.b16 %v647, %v644
    %v885 = vpack.c.b16 %v648, %v645
    %v886 = vpack.c.b16 %v652, %v649
    %v887 = vpack.c.b16 %v653, %v650
    %v888 = vpack.c.b16 %v654, %v651
    %v889 = vpack.c.b16 %v658, %v655
    %v890 = vpack.c.b16 %v659, %v656
    %v891 = vpack.c.b16 %v660, %v657
    %v892 = vpack.c.b16 %v664, %v661
    %v893 = vpack.c.b16 %v665, %v662
    %v894 = vpack.c.b16 %v666, %v663
    %v895 = vpack.c.b16 %v670, %v667
    %v896 = vpack.c.b16 %v671, %v668
    %v897 = vpack.c.b16 %v672, %v669
    %v898 = vpack.c.b16 %v676, %v673
    %v899 = vpack.c.b16 %v677, %v674
    %v900 = vpack.c.b16 %v678, %v675
    %v901 = vpack.c.b16 %v682, %v679
    %v902 = vpack.c.b16 %v683, %v680
    %v903 = vpack.c.b16 %v684, %v681
    %v904 = vpack.c.b16 %v688, %v685
    %v905 = vpack.c.b16 %v689, %v686
    %v906 = vpack.c.b16 %v690, %v687
    %v907 = vpack.c.b16 %v694, %v691
    %v908 = vpack.c.b16 %v695, %v692
    %v909 = vpack.c.b16 %v696, %v693
    %v910 = vpack.c.b16 %v700, %v697
    %v911 = vpack.c.b16 %v701, %v698
    %v912 = vpack.c.b16 %v702, %v699
    %v913 = vpack.c.b16 %v706, %v703
    %v914 = vpack.c.b16 %v707, %v704
    %v915 = vpack.c.b16 %v708, %v705
    %v916 = vpack.c.b16 %v712, %v709
    %v917 = vpack.c.b16 %v713, %v710
    %v918 = vpack.c.b16 %v714, %v711
    %v919 = vpack.c.b16 %v718, %v715
    %v920 = vpack.c.b16 %v719, %v716
    %v921 = vpack.c.b16 %v720, %v717
    %v922 = vpack.c.b16 %v724, %v721
    %v923 = vpack.c.b16 %v725, %v722
    %v924 = vpack.c.b16 %v726, %v723
    %v925 = vpack.c.b16 %v730, %v727
    %v926 = vpack.c.b16 %v731, %v728
    %v927 = vpack.c.b16 %v732, %v729
    %v928 = vpack.c.b16 %v736, %v733
    %v929 = vpack.c.b16 %v737, %v734
    %v930 = vpack.c.b16 %v738, %v735
    %v931 = vpack.c.b16 %v742, %v739
    %v932 = vpack.c.b16 %v743, %v740
    %v933 = vpack.c.b16 %v744, %v741
    %v934 = vpack.c.b16 %v748, %v745
    %v935 = vpack.c.b16 %v749, %v746
    %v936 = vpack.c.b16 %v750, %v747
    %v937 = vpack.c.b16 %v754, %v751
    %v938 = vpack.c.b16 %v755, %v752
    %v939 = vpack.c.b16 %v756, %v753
    %v940 = vpack.c.b16 %v760, %v757
    %v941 = vpack.c.b16 %v761, %v758
    %v942 = vpack.c.b16 %v762, %v759
    %v943 = vpack.c.b16 %v766, %v763
    %v944 = vpack.c.b16 %v767, %v764
    %v945 = vpack.c.b16 %v768, %v765
    %v946 = vpack.c.b16 %v772, %v769
    %v947 = vpack.c.b16 %v773, %v770
    %v948 = vpack.c.b16 %v774, %v771
    %v949 = vpack.c.b16 %v778, %v775
    %v950 = vpack.c.b16 %v779, %v776
    %v951 = vpack.c.b16 %v780, %v777
    %v952 = vpack.c.b16 %v784, %v781
    %v953 = vpack.c.b16 %v785, %v782
    %v954 = vpack.c.b16 %v786, %v783
    %v955 = vpack.c.b16 %v790, %v787
    %v956 = vpack.c.b16 %v791, %v788
    %v957 = vpack.c.b16 %v792, %v789
    %v958 = vpack.c.b16 %v796, %v793
    %v959 = vpack.c.b16 %v797, %v794
    %v960 = vpack.c.b16 %v798, %v795
    %v961 = vpack.c.b16 %v802, %v799
    %v962 = vpack.c.b16 %v803, %v800
    %v963 = vpack.c.b16 %v804, %v801
    %v964 = vpack.c.b16 %v808, %v805
    %v965 = vpack.c.b16 %v809, %v806
    %v966 = vpack.c.b16 %v810, %v807
    %v967 = vpack.c.b16 %v814, %v811
    %v968 = vpack.c.b16 %v815, %v812
    %v969 = vpack.c.b16 %v816, %v813
    %v970 = vpack.c.b16 %v820, %v817
    %v971 = vpack.c.b16 %v821, %v818
    %v972 = vpack.c.b16 %v822, %v819
    %v973 = vpack.c.b16 %v826, %v823
    %v974 = vpack.c.b16 %v827, %v824
    %v975 = vpack.c.b16 %v828, %v825
    %vm1123 = vcmask 130048
    %v1125 = vsel %vm1123, %v332, 0
    %1127 = vmatprep.subr.bf16.mxu0 %v830
    %1128 = vmatpush1.bf16.msra.mxu0 %v829
    %1129 = vmatprep.subr.bf16.mxu0 %v833
    %1130 = vmatpush1.bf16.msra.mxu0 %v832
    %1131 = vmatprep.subr.bf16.mxu0 %v836
    %1132 = vmatpush1.bf16.msra.mxu0 %v835
    %1133 = vmatprep.subr.bf16.mxu0 %v839
    %1134 = vmatpush1.bf16.msra.mxu0 %v838
    %1135 = vmatprep.subr.bf16.mxu0 %v842
    %1136 = vmatpush1.bf16.msra.mxu0 %v841
    %1137 = vmatprep.subr.bf16.mxu0 %v845
    %1138 = vmatpush1.bf16.msra.mxu0 %v844
    %1139 = vmatprep.subr.bf16.mxu0 %v848
    %1140 = vmatpush1.bf16.msra.mxu0 %v847
    %1141 = vmatprep.subr.bf16.mxu0 %v851
    %1142 = vmatpush1.bf16.msra.mxu0 %v850
    %1143 = vmatprep.subr.bf16.mxu0 %v854
    %1144 = vmatpush1.bf16.msra.mxu0 %v853
    %1145 = vmatprep.subr.bf16.mxu0 %v857
    %1146 = vmatpush1.bf16.msra.mxu0 %v856
    %1147 = vmatprep.subr.bf16.mxu0 %v860
    %1148 = vmatpush1.bf16.msra.mxu0 %v859
    %1149 = vmatprep.subr.bf16.mxu0 %v863
    %1150 = vmatpush1.bf16.msra.mxu0 %v862
    %1151 = vmatprep.subr.bf16.mxu0 %v866
    %1152 = vmatpush1.bf16.msra.mxu0 %v865
    %1153 = vmatprep.subr.bf16.mxu0 %v869
    %1154 = vmatpush1.bf16.msra.mxu0 %v868
    %1155 = vmatprep.subr.bf16.mxu0 %v872
    %1156 = vmatpush1.bf16.msra.mxu0 %v871
    %1157 = vmatprep.subr.bf16.mxu0 %v875
    %1158 = vmatpush1.bf16.msra.mxu0 %v874
    %1159 = vmatprep.mubr.bf16.mxu0 %v327
    %1160 = vmatmul.mubr.bf16.gmra.mrb[0].mxu0 %v326
    %v1161 = vpop.f32.mrb[0].mxu0
    %v1162 = vadd.f32 %v292, %v1161
    %v1163 = vpop.f32.mrb[0].mxu0
    %v1164 = vadd.f32 %v296, %v1163
    %v1165 = vpop.f32.mrb[0].mxu0
    %v1166 = vadd.f32 %v292, %v1165
    %v1167 = vpop.f32.mrb[0].mxu0
    %v1168 = vadd.f32 %v296, %v1167
    %1169 = vdwg.mxu0
    %1170 = vmatprep.subr.bf16.mxu0 %v878
    %1171 = vmatpush1.bf16.msra.mxu0 %v877
    %1172 = vmatprep.subr.bf16.mxu0 %v881
    %1173 = vmatpush1.bf16.msra.mxu0 %v880
    %1174 = vmatprep.subr.bf16.mxu0 %v884
    %1175 = vmatpush1.bf16.msra.mxu0 %v883
    %1176 = vmatprep.subr.bf16.mxu0 %v887
    %1177 = vmatpush1.bf16.msra.mxu0 %v886
    %1178 = vmatprep.subr.bf16.mxu0 %v890
    %1179 = vmatpush1.bf16.msra.mxu0 %v889
    %1180 = vmatprep.subr.bf16.mxu0 %v893
    %1181 = vmatpush1.bf16.msra.mxu0 %v892
    %1182 = vmatprep.subr.bf16.mxu0 %v896
    %1183 = vmatpush1.bf16.msra.mxu0 %v895
    %1184 = vmatprep.subr.bf16.mxu0 %v899
    %1185 = vmatpush1.bf16.msra.mxu0 %v898
    %1186 = vmatprep.subr.bf16.mxu0 %v902
    %1187 = vmatpush1.bf16.msra.mxu0 %v901
    %1188 = vmatprep.subr.bf16.mxu0 %v905
    %1189 = vmatpush1.bf16.msra.mxu0 %v904
    %1190 = vmatprep.subr.bf16.mxu0 %v908
    %1191 = vmatpush1.bf16.msra.mxu0 %v907
    %1192 = vmatprep.subr.bf16.mxu0 %v911
    %1193 = vmatpush1.bf16.msra.mxu0 %v910
    %1194 = vmatprep.subr.bf16.mxu0 %v914
    %1195 = vmatpush1.bf16.msra.mxu0 %v913
    %1196 = vmatprep.subr.bf16.mxu0 %v917
    %1197 = vmatpush1.bf16.msra.mxu0 %v916
    %1198 = vmatprep.subr.bf16.mxu0 %v920
    %1199 = vmatpush1.bf16.msra.mxu0 %v919
    %1200 = vmatprep.subr.bf16.mxu0 %v923
    %1201 = vmatpush1.bf16.msra.mxu0 %v922
    %1202 = vmatprep.mubr.bf16.mxu0 %v329
    %1203 = vmatmul.mubr.bf16.gmra.mrb[0].mxu0 %v328
    %v1204 = vpop.f32.mrb[0].mxu0
    %v1205 = vadd.f32 %v1162, %v1204
    %v1206 = vpop.f32.mrb[0].mxu0
    %v1207 = vadd.f32 %v1164, %v1206
    %v1208 = vpop.f32.mrb[0].mxu0
    %v1209 = vadd.f32 %v1166, %v1208
    %v1210 = vpop.f32.mrb[0].mxu0
    %v1211 = vadd.f32 %v1168, %v1210
    %1212 = vdwg.mxu0
    %1213 = vmatprep.subr.bf16.mxu0 %v926
    %1214 = vmatpush1.bf16.msra.mxu0 %v925
    %1215 = vmatprep.subr.bf16.mxu0 %v929
    %1216 = vmatpush1.bf16.msra.mxu0 %v928
    %1217 = vmatprep.subr.bf16.mxu0 %v932
    %1218 = vmatpush1.bf16.msra.mxu0 %v931
    %1219 = vmatprep.subr.bf16.mxu0 %v935
    %1220 = vmatpush1.bf16.msra.mxu0 %v934
    %1221 = vmatprep.subr.bf16.mxu0 %v938
    %1222 = vmatpush1.bf16.msra.mxu0 %v937
    %1223 = vmatprep.subr.bf16.mxu0 %v941
    %1224 = vmatpush1.bf16.msra.mxu0 %v940
    %1225 = vmatprep.subr.bf16.mxu0 %v944
    %1226 = vmatpush1.bf16.msra.mxu0 %v943
    %1227 = vmatprep.subr.bf16.mxu0 %v947
    %1228 = vmatpush1.bf16.msra.mxu0 %v946
    %1229 = vmatprep.subr.bf16.mxu0 %v950
    %1230 = vmatpush1.bf16.msra.mxu0 %v949
    %1231 = vmatprep.subr.bf16.mxu0 %v953
    %1232 = vmatpush1.bf16.msra.mxu0 %v952
    %1233 = vmatprep.subr.bf16.mxu0 %v956
    %1234 = vmatpush1.bf16.msra.mxu0 %v955
    %1235 = vmatprep.subr.bf16.mxu0 %v959
    %1236 = vmatpush1.bf16.msra.mxu0 %v958
    %1237 = vmatprep.subr.bf16.mxu0 %v962
    %1238 = vmatpush1.bf16.msra.mxu0 %v961
    %1239 = vmatprep.subr.bf16.mxu0 %v965
    %1240 = vmatpush1.bf16.msra.mxu0 %v964
    %1241 = vmatprep.subr.bf16.mxu0 %v968
    %1242 = vmatpush1.bf16.msra.mxu0 %v967
    %1243 = vmatprep.subr.bf16.mxu0 %v971
    %1244 = vmatpush1.bf16.msra.mxu0 %v970
    %1245 = vmatprep.mubr.bf16.mxu0 %v331
    %1246 = vmatmul.mubr.bf16.gmra.mrb[0].mxu0 %v330
    %v1247 = vpop.f32.mrb[0].mxu0
    %v1248 = vadd.f32 %v1205, %v1247
    %v1249 = vpop.f32.mrb[0].mxu0
    %v1250 = vadd.f32 %v1207, %v1249
    %v1251 = vpop.f32.mrb[0].mxu0
    %v1252 = vadd.f32 %v1209, %v1251
    %v1253 = vpop.f32.mrb[0].mxu0
    %v1254 = vadd.f32 %v1211, %v1253
    %1255 = vdwg.mxu0
    %1256 = vmatprep.subr.bf16.mxu0 %v974
    %1257 = vmatpush1.bf16.msra.mxu0 %v973
    %1258 = vmatprep.subr.bf16.mxu0 0
    %1259 = vmatpush1.bf16.msra.mxu0 0
    %1260 = vmatprep.subr.bf16.mxu0 0
    %1261 = vmatpush1.bf16.msra.mxu0 0
    %1262 = vmatprep.subr.bf16.mxu0 0
    %1263 = vmatpush1.bf16.msra.mxu0 0
    %1264 = vmatprep.subr.bf16.mxu0 0
    %1265 = vmatpush1.bf16.msra.mxu0 0
    %1266 = vmatprep.subr.bf16.mxu0 0
    %1267 = vmatpush1.bf16.msra.mxu0 0
    %1268 = vmatprep.subr.bf16.mxu0 0
    %1269 = vmatpush1.bf16.msra.mxu0 0
    %1270 = vmatprep.subr.bf16.mxu0 0
    %1271 = vmatpush1.bf16.msra.mxu0 0
    %1272 = vmatprep.subr.bf16.mxu0 0
    %1273 = vmatpush1.bf16.msra.mxu0 0
    %1274 = vmatprep.subr.bf16.mxu0 0
    %1275 = vmatpush1.bf16.msra.mxu0 0
    %1276 = vmatprep.subr.bf16.mxu0 0
    %1277 = vmatpush1.bf16.msra.mxu0 0
    %1278 = vmatprep.subr.bf16.mxu0 0
    %1279 = vmatpush1.bf16.msra.mxu0 0
    %1280 = vmatprep.subr.bf16.mxu0 0
    %1281 = vmatpush1.bf16.msra.mxu0 0
    %1282 = vmatprep.subr.bf16.mxu0 0
    %1283 = vmatpush1.bf16.msra.mxu0 0
    %1284 = vmatprep.subr.bf16.mxu0 0
    %1285 = vmatpush1.bf16.msra.mxu0 0
    %1286 = vmatprep.subr.bf16.mxu0 0
    %1287 = vmatpush1.bf16.msra.mxu0 0
    %1288 = vmatprep.mubr.bf16.mxu0 0
    %1289 = vmatmul.mubr.bf16.gmra.mrb[0].mxu0 %v1125
    %v1290 = vpop.f32.mrb[0].mxu0
    %v1291 = vadd.f32 %v1248, %v1290
    %v1292 = vpop.f32.mrb[0].mxu0
    %v1293 = vadd.f32 %v1250, %v1292
    %v1294 = vpop.f32.mrb[0].mxu0
    %v1295 = vadd.f32 %v1252, %v1294
    %v1296 = vpop.f32.mrb[0].mxu0
    %v1297 = vadd.f32 %v1254, %v1296
    %1298 = vdwg.mxu0
    %1299 = vmatprep.subr.bf16.mxu0 0
    %1300 = vmatpush1.bf16.msra.mxu0 %v831
    %1301 = vmatprep.subr.bf16.mxu0 0
    %1302 = vmatpush1.bf16.msra.mxu0 %v834
    %1303 = vmatprep.subr.bf16.mxu0 0
    %1304 = vmatpush1.bf16.msra.mxu0 %v837
    %1305 = vmatprep.subr.bf16.mxu0 0
    %1306 = vmatpush1.bf16.msra.mxu0 %v840
    %1307 = vmatprep.subr.bf16.mxu0 0
    %1308 = vmatpush1.bf16.msra.mxu0 %v843
    %1309 = vmatprep.subr.bf16.mxu0 0
    %1310 = vmatpush1.bf16.msra.mxu0 %v846
    %1311 = vmatprep.subr.bf16.mxu0 0
    %1312 = vmatpush1.bf16.msra.mxu0 %v849
    %1313 = vmatprep.subr.bf16.mxu0 0
    %1314 = vmatpush1.bf16.msra.mxu0 %v852
    %1315 = vmatprep.subr.bf16.mxu0 0
    %1316 = vmatpush1.bf16.msra.mxu0 %v855
    %1317 = vmatprep.subr.bf16.mxu0 0
    %1318 = vmatpush1.bf16.msra.mxu0 %v858
    %1319 = vmatprep.subr.bf16.mxu0 0
    %1320 = vmatpush1.bf16.msra.mxu0 %v861
    %1321 = vmatprep.subr.bf16.mxu0 0
    %1322 = vmatpush1.bf16.msra.mxu0 %v864
    %1323 = vmatprep.subr.bf16.mxu0 0
    %1324 = vmatpush1.bf16.msra.mxu0 %v867
    %1325 = vmatprep.subr.bf16.mxu0 0
    %1326 = vmatpush1.bf16.msra.mxu0 %v870
    %1327 = vmatprep.subr.bf16.mxu0 0
    %1328 = vmatpush1.bf16.msra.mxu0 %v873
    %1329 = vmatprep.subr.bf16.mxu0 0
    %1330 = vmatpush1.bf16.msra.mxu0 %v876
    %1331 = vmatprep.mubr.bf16.mxu0 %v327
    %1332 = vmatmul.mubr.bf16.gmra.mrb[0].mxu0 %v326
    %v1333 = vpop.f32.mrb[0].mxu0
    %v1334 = vadd.f32 %v300, %v1333
    %v1335 = vpop.f32.mrb[0].mxu0
    %v1336 = vpop.f32.mrb[0].mxu0
    %v1337 = vadd.f32 %v300, %v1336
    %v1338 = vpop.f32.mrb[0].mxu0
    %1339 = vdwg.mxu0
    %1340 = vmatprep.subr.bf16.mxu0 0
    %1341 = vmatpush1.bf16.msra.mxu0 %v879
    %1342 = vmatprep.subr.bf16.mxu0 0
    %1343 = vmatpush1.bf16.msra.mxu0 %v882
    %1344 = vmatprep.subr.bf16.mxu0 0
    %1345 = vmatpush1.bf16.msra.mxu0 %v885
    %1346 = vmatprep.subr.bf16.mxu0 0
    %1347 = vmatpush1.bf16.msra.mxu0 %v888
    %1348 = vmatprep.subr.bf16.mxu0 0
    %1349 = vmatpush1.bf16.msra.mxu0 %v891
    %1350 = vmatprep.subr.bf16.mxu0 0
    %1351 = vmatpush1.bf16.msra.mxu0 %v894
    %1352 = vmatprep.subr.bf16.mxu0 0
    %1353 = vmatpush1.bf16.msra.mxu0 %v897
    %1354 = vmatprep.subr.bf16.mxu0 0
    %1355 = vmatpush1.bf16.msra.mxu0 %v900
    %1356 = vmatprep.subr.bf16.mxu0 0
    %1357 = vmatpush1.bf16.msra.mxu0 %v903
    %1358 = vmatprep.subr.bf16.mxu0 0
    %1359 = vmatpush1.bf16.msra.mxu0 %v906
    %1360 = vmatprep.subr.bf16.mxu0 0
    %1361 = vmatpush1.bf16.msra.mxu0 %v909
    %1362 = vmatprep.subr.bf16.mxu0 0
    %1363 = vmatpush1.bf16.msra.mxu0 %v912
    %1364 = vmatprep.subr.bf16.mxu0 0
    %1365 = vmatpush1.bf16.msra.mxu0 %v915
    %1366 = vmatprep.subr.bf16.mxu0 0
    %1367 = vmatpush1.bf16.msra.mxu0 %v918
    %1368 = vmatprep.subr.bf16.mxu0 0
    %1369 = vmatpush1.bf16.msra.mxu0 %v921
    %1370 = vmatprep.subr.bf16.mxu0 0
    %1371 = vmatpush1.bf16.msra.mxu0 %v924
    %1372 = vmatprep.mubr.bf16.mxu0 %v329
    %1373 = vmatmul.mubr.bf16.gmra.mrb[0].mxu0 %v328
    %v1374 = vpop.f32.mrb[0].mxu0
    %v1375 = vadd.f32 %v1334, %v1374
    %v1376 = vpop.f32.mrb[0].mxu0
    %v1377 = vpop.f32.mrb[0].mxu0
    %v1378 = vadd.f32 %v1337, %v1377
    %v1379 = vpop.f32.mrb[0].mxu0
    %1380 = vdwg.mxu0
    %1381 = vmatprep.subr.bf16.mxu0 0
    %1382 = vmatpush1.bf16.msra.mxu0 %v927
    %1383 = vmatprep.subr.bf16.mxu0 0
    %1384 = vmatpush1.bf16.msra.mxu0 %v930
    %1385 = vmatprep.subr.bf16.mxu0 0
    %1386 = vmatpush1.bf16.msra.mxu0 %v933
    %1387 = vmatprep.subr.bf16.mxu0 0
    %1388 = vmatpush1.bf16.msra.mxu0 %v936
    %1389 = vmatprep.subr.bf16.mxu0 0
    %1390 = vmatpush1.bf16.msra.mxu0 %v939
    %1391 = vmatprep.subr.bf16.mxu0 0
    %1392 = vmatpush1.bf16.msra.mxu0 %v942
    %1393 = vmatprep.subr.bf16.mxu0 0
    %1394 = vmatpush1.bf16.msra.mxu0 %v945
    %1395 = vmatprep.subr.bf16.mxu0 0
    %1396 = vmatpush1.bf16.msra.mxu0 %v948
    %1397 = vmatprep.subr.bf16.mxu0 0
    %1398 = vmatpush1.bf16.msra.mxu0 %v951
    %1399 = vmatprep.subr.bf16.mxu0 0
    %1400 = vmatpush1.bf16.msra.mxu0 %v954
    %1401 = vmatprep.subr.bf16.mxu0 0
    %1402 = vmatpush1.bf16.msra.mxu0 %v957
    %1403 = vmatprep.subr.bf16.mxu0 0
    %1404 = vmatpush1.bf16.msra.mxu0 %v960
    %1405 = vmatprep.subr.bf16.mxu0 0
    %1406 = vmatpush1.bf16.msra.mxu0 %v963
    %1407 = vmatprep.subr.bf16.mxu0 0
    %1408 = vmatpush1.bf16.msra.mxu0 %v966
    %1409 = vmatprep.subr.bf16.mxu0 0
    %1410 = vmatpush1.bf16.msra.mxu0 %v969
    %1411 = vmatprep.subr.bf16.mxu0 0
    %1412 = vmatpush1.bf16.msra.mxu0 %v972
    %1413 = vmatprep.mubr.bf16.mxu0 %v331
    %1414 = vmatmul.mubr.bf16.gmra.mrb[0].mxu0 %v330
    %v1415 = vpop.f32.mrb[0].mxu0
    %v1416 = vadd.f32 %v1375, %v1415
    %v1417 = vpop.f32.mrb[0].mxu0
    %v1418 = vpop.f32.mrb[0].mxu0
    %v1419 = vadd.f32 %v1378, %v1418
    %v1420 = vpop.f32.mrb[0].mxu0
    %1421 = vdwg.mxu0
    %1422 = vmatprep.subr.bf16.mxu0 0
    %1423 = vmatpush1.bf16.msra.mxu0 %v975
    %1424 = vmatprep.subr.bf16.mxu0 0
    %1425 = vmatpush1.bf16.msra.mxu0 0
    %1426 = vmatprep.subr.bf16.mxu0 0
    %1427 = vmatpush1.bf16.msra.mxu0 0
    %1428 = vmatprep.subr.bf16.mxu0 0
    %1429 = vmatpush1.bf16.msra.mxu0 0
    %1430 = vmatprep.subr.bf16.mxu0 0
    %1431 = vmatpush1.bf16.msra.mxu0 0
    %1432 = vmatprep.subr.bf16.mxu0 0
    %1433 = vmatpush1.bf16.msra.mxu0 0
    %1434 = vmatprep.subr.bf16.mxu0 0
    %1435 = vmatpush1.bf16.msra.mxu0 0
    %1436 = vmatprep.subr.bf16.mxu0 0
    %1437 = vmatpush1.bf16.msra.mxu0 0
    %1438 = vmatprep.subr.bf16.mxu0 0
    %1439 = vmatpush1.bf16.msra.mxu0 0
    %1440 = vmatprep.subr.bf16.mxu0 0
    %1441 = vmatpush1.bf16.msra.mxu0 0
    %1442 = vmatprep.subr.bf16.mxu0 0
    %1443 = vmatpush1.bf16.msra.mxu0 0
    %1444 = vmatprep.subr.bf16.mxu0 0
    %1445 = vmatpush1.bf16.msra.mxu0 0
    %1446 = vmatprep.subr.bf16.mxu0 0
    %1447 = vmatpush1.bf16.msra.mxu0 0
    %1448 = vmatprep.subr.bf16.mxu0 0
    %1449 = vmatpush1.bf16.msra.mxu0 0
    %1450 = vmatprep.subr.bf16.mxu0 0
    %1451 = vmatpush1.bf16.msra.mxu0 0
    %1452 = vmatprep.subr.bf16.mxu0 0
    %1453 = vmatpush1.bf16.msra.mxu0 0
    %1454 = vmatprep.mubr.bf16.mxu0 0
    %1455 = vmatmul.mubr.bf16.gmra.mrb[0].mxu0 %v1125
    %v1456 = vpop.f32.mrb[0].mxu0
    %v1457 = vadd.f32 %v1416, %v1456
    %v1458 = vpop.f32.mrb[0].mxu0
    %v1459 = vpop.f32.mrb[0].mxu0
    %v1460 = vadd.f32 %v1419, %v1459
    %v1461 = vpop.f32.mrb[0].mxu0
    %1462 = vdwg.mxu0
    %v1463 = vmax.f32 %v1291, 0.0
    %v1464 = vmax.f32 %v1293, 0.0
    %v1465 = vmax.f32 %v1457, 0.0
    %v1466 = vmax.f32 %v1295, 0.0
    %v1467 = vmax.f32 %v1297, 0.0
    %v1468 = vmax.f32 %v1460, 0.0
    %v1469 = vpack.c.bf16 %v1466, %v1463
    %v1470 = vpack.c.bf16 %v1467, %v1464
    %v1471 = vpack.c.bf16 %v1468, %v1465
    %v1472 = vld [vmem:[#allocation7] sm:$0xf]
    %v1473 = vld [vmem:[#allocation7 + $0x4] sm:$0xf]
    %v1474 = vld [vmem:[#allocation7 + $0x8] sm:$0xf]
    %v1475 = vld [vmem:[#allocation7 + $0xc] sm:$0xf]
    %v1476 = vld [vmem:[#allocation7 + $0x10] sm:$0xf]
    %v1477 = vld [vmem:[#allocation7 + $0x14] sm:$0xf]
    %v1478 = vld [vmem:[#allocation7 + $0x18] sm:$0xf]
    %v1479 = vld [vmem:[#allocation7 + $0x1c] sm:$0xf]
    %v1480 = vld [vmem:[#allocation7 + $0x20] sm:$0xf]
    %v1481 = vld [vmem:[#allocation7 + $0x24] sm:$0xf]
    %v1482 = vld [vmem:[#allocation7 + $0x28] sm:$0xf]
    %v1483 = vld [vmem:[#allocation7 + $0x2c] sm:$0xf]
    %v1484 = vld [vmem:[#allocation7 + $0x30] sm:$0xf]
    %v1485 = vld [vmem:[#allocation7 + $0x34] sm:$0xf]
    %v1486 = vld [vmem:[#allocation7 + $0x38] sm:$0xf]
    %v1487 = vld [vmem:[#allocation7 + $0x3c] sm:$0xf]
    %v1488 = vld [vmem:[#allocation7 + $0x40] sm:$0xf]
    %v1489 = vld [vmem:[#allocation7 + $0x44] sm:$0xf]
    %v1490 = vld [vmem:[#allocation7 + $0x48] sm:$0xf]
    %v1491 = vld [vmem:[#allocation7 + $0x4c] sm:$0xf]
    %v1492 = vld [vmem:[#allocation7 + $0x50] sm:$0xf]
    %v1493 = vld [vmem:[#allocation7 + $0x54] sm:$0xf]
    %v1494 = vld [vmem:[#allocation7 + $0x58] sm:$0xf]
    %v1495 = vld [vmem:[#allocation7 + $0x5c] sm:$0xf]
    %v1496 = vld [vmem:[#allocation7 + $0x60] sm:$0xf]
    %v1497 = vld [vmem:[#allocation7 + $0x64] sm:$0xf]
    %v1498 = vld [vmem:[#allocation7 + $0x68] sm:$0xf]
    %v1499 = vld [vmem:[#allocation7 + $0x6c] sm:$0xf]
    %v1500 = vld [vmem:[#allocation7 + $0x70] sm:$0xf]
    %v1501 = vld [vmem:[#allocation7 + $0x74] sm:$0xf]
    %v1502 = vld [vmem:[#allocation7 + $0x78] sm:$0xf]
    %v1503 = vld [vmem:[#allocation7 + $0x7c] sm:$0xf]
    %v1504 = vld [vmem:[#allocation7 + $0x80] sm:$0xf]
    %v1505 = vld [vmem:[#allocation7 + $0x84] sm:$0xf]
    %v1506 = vld [vmem:[#allocation7 + $0x88] sm:$0xf]
    %v1507 = vld [vmem:[#allocation7 + $0x8c] sm:$0xf]
    %v1508 = vld [vmem:[#allocation7 + $0x90] sm:$0xf]
    %v1509 = vld [vmem:[#allocation7 + $0x94] sm:$0xf]
    %v1510 = vld [vmem:[#allocation7 + $0x98] sm:$0xf]
    %v1511 = vld [vmem:[#allocation7 + $0x9c] sm:$0xf]
    %v1512 = vld [vmem:[#allocation7 + $0xa0] sm:$0xf]
    %v1513 = vld [vmem:[#allocation7 + $0xa4] sm:$0xf]
    %v1514 = vld [vmem:[#allocation7 + $0xa8] sm:$0xf]
    %v1515 = vld [vmem:[#allocation7 + $0xac] sm:$0xf]
    %v1516 = vld [vmem:[#allocation7 + $0xb0] sm:$0xf]
    %v1517 = vld [vmem:[#allocation7 + $0xb4] sm:$0xf]
    %v1518 = vld [vmem:[#allocation7 + $0xb8] sm:$0xf]
    %v1519 = vld [vmem:[#allocation7 + $0xbc] sm:$0xf]
    %v1520 = vld [vmem:[%s4] sm:$0x1]
    %v1522 = vlaneseq
    %v1523 = vshrl.u32 %v1522, 7
    %v1524 = vsub.s32 0, %v1523
    %v1525 = vrot.slane %v1520, %v1524
    %v1575 = vunpack.c.l.b16 %v1472
    %v1576 = vunpack.c.l.b16 %v1473
    %v1577 = vunpack.c.l.b16 %v1474
    %v1578 = vunpack.c.l.b16 %v1475
    %v1579 = vunpack.c.l.b16 %v1476
    %v1580 = vunpack.c.l.b16 %v1477
    %v1581 = vunpack.c.l.b16 %v1478
    %v1582 = vunpack.c.l.b16 %v1479
    %v1583 = vunpack.c.l.b16 %v1480
    %v1584 = vunpack.c.l.b16 %v1481
    %v1585 = vunpack.c.l.b16 %v1482
    %v1586 = vunpack.c.l.b16 %v1483
    %v1587 = vunpack.c.l.b16 %v1484
    %v1588 = vunpack.c.l.b16 %v1485
    %v1589 = vunpack.c.l.b16 %v1486
    %v1590 = vunpack.c.l.b16 %v1487
    %v1591 = vunpack.c.l.b16 %v1488
    %v1592 = vunpack.c.l.b16 %v1489
    %v1593 = vunpack.c.l.b16 %v1490
    %v1594 = vunpack.c.l.b16 %v1491
    %v1595 = vunpack.c.l.b16 %v1492
    %v1596 = vunpack.c.l.b16 %v1493
    %v1597 = vunpack.c.l.b16 %v1494
    %v1598 = vunpack.c.l.b16 %v1495
    %v1599 = vunpack.c.l.b16 %v1496
    %v1600 = vunpack.c.l.b16 %v1497
    %v1601 = vunpack.c.l.b16 %v1498
    %v1602 = vunpack.c.l.b16 %v1499
    %v1603 = vunpack.c.l.b16 %v1500
    %v1604 = vunpack.c.l.b16 %v1501
    %v1605 = vunpack.c.l.b16 %v1502
    %v1606 = vunpack.c.l.b16 %v1503
    %v1607 = vunpack.c.l.b16 %v1504
    %v1608 = vunpack.c.l.b16 %v1505
    %v1609 = vunpack.c.l.b16 %v1506
    %v1610 = vunpack.c.l.b16 %v1507
    %v1611 = vunpack.c.l.b16 %v1508
    %v1612 = vunpack.c.l.b16 %v1509
    %v1613 = vunpack.c.l.b16 %v1510
    %v1614 = vunpack.c.l.b16 %v1511
    %v1615 = vunpack.c.l.b16 %v1512
    %v1616 = vunpack.c.l.b16 %v1513
    %v1617 = vunpack.c.l.b16 %v1514
    %v1618 = vunpack.c.l.b16 %v1515
    %v1619 = vunpack.c.l.b16 %v1516
    %v1620 = vunpack.c.l.b16 %v1517
    %v1621 = vunpack.c.l.b16 %v1518
    %v1622 = vunpack.c.l.b16 %v1519
    %v1623 = vpack.c.b16 %v1576, %v1575
    %v1624 = vpack.c.b16 %v1578, %v1577
    %v1625 = vpack.c.b16 %v1580, %v1579
    %v1626 = vpack.c.b16 %v1582, %v1581
    %v1627 = vpack.c.b16 %v1584, %v1583
    %v1628 = vpack.c.b16 %v1586, %v1585
    %v1629 = vpack.c.b16 %v1588, %v1587
    %v1630 = vpack.c.b16 %v1590, %v1589
    %v1631 = vpack.c.b16 %v1592, %v1591
    %v1632 = vpack.c.b16 %v1594, %v1593
    %v1633 = vpack.c.b16 %v1596, %v1595
    %v1634 = vpack.c.b16 %v1598, %v1597
    %v1635 = vpack.c.b16 %v1600, %v1599
    %v1636 = vpack.c.b16 %v1602, %v1601
    %v1637 = vpack.c.b16 %v1604, %v1603
    %v1638 = vpack.c.b16 %v1606, %v1605
    %v1639 = vpack.c.b16 %v1608, %v1607
    %v1640 = vpack.c.b16 %v1610, %v1609
    %v1641 = vpack.c.b16 %v1612, %v1611
    %v1642 = vpack.c.b16 %v1614, %v1613
    %v1643 = vpack.c.b16 %v1616, %v1615
    %v1644 = vpack.c.b16 %v1618, %v1617
    %v1645 = vpack.c.b16 %v1620, %v1619
    %v1646 = vpack.c.b16 %v1622, %v1621
    %1671 = vmatprep.subr.bf16.mxu0 0
    %1672 = vmatpush1.bf16.msra.mxu0 %v1623
    %1673 = vmatprep.subr.bf16.mxu0 0
    %1674 = vmatpush1.bf16.msra.mxu0 %v1624
    %1675 = vmatprep.subr.bf16.mxu0 0
    %1676 = vmatpush1.bf16.msra.mxu0 %v1625
    %1677 = vmatprep.subr.bf16.mxu0 0
    %1678 = vmatpush1.bf16.msra.mxu0 %v1626
    %1679 = vmatprep.subr.bf16.mxu0 0
    %1680 = vmatpush1.bf16.msra.mxu0 %v1627
    %1681 = vmatprep.subr.bf16.mxu0 0
    %1682 = vmatpush1.bf16.msra.mxu0 %v1628
    %1683 = vmatprep.subr.bf16.mxu0 0
    %1684 = vmatpush1.bf16.msra.mxu0 %v1629
    %1685 = vmatprep.subr.bf16.mxu0 0
    %1686 = vmatpush1.bf16.msra.mxu0 %v1630
    %1687 = vmatprep.subr.bf16.mxu0 0
    %1688 = vmatpush1.bf16.msra.mxu0 %v1631
    %1689 = vmatprep.subr.bf16.mxu0 0
    %1690 = vmatpush1.bf16.msra.mxu0 %v1632
    %1691 = vmatprep.subr.bf16.mxu0 0
    %1692 = vmatpush1.bf16.msra.mxu0 %v1633
    %1693 = vmatprep.subr.bf16.mxu0 0
    %1694 = vmatpush1.bf16.msra.mxu0 %v1634
    %1695 = vmatprep.subr.bf16.mxu0 0
    %1696 = vmatpush1.bf16.msra.mxu0 %v1635
    %1697 = vmatprep.subr.bf16.mxu0 0
    %1698 = vmatpush1.bf16.msra.mxu0 %v1636
    %1699 = vmatprep.subr.bf16.mxu0 0
    %1700 = vmatpush1.bf16.msra.mxu0 %v1637
    %1701 = vmatprep.subr.bf16.mxu0 0
    %1702 = vmatpush1.bf16.msra.mxu0 %v1638
    %1703 = vmatprep.mubr.bf16.mxu0 %v1470
    %1704 = vmatmul.mubr.bf16.gmra.mrb[0].mxu0 %v1469
    %v1705 = vpop.f32.mrb[0].mxu0
    %v1706 = vadd.f32 %v1525, %v1705
    %v1707 = vpop.f32.mrb[0].mxu0
    %v1708 = vpop.f32.mrb[0].mxu0
    %v1709 = vadd.f32 %v1525, %v1708
    %v1710 = vpop.f32.mrb[0].mxu0
    %1711 = vdwg.mxu0
    %1712 = vmatprep.subr.bf16.mxu0 0
    %1713 = vmatpush1.bf16.msra.mxu0 %v1639
    %1714 = vmatprep.subr.bf16.mxu0 0
    %1715 = vmatpush1.bf16.msra.mxu0 %v1640
    %1716 = vmatprep.subr.bf16.mxu0 0
    %1717 = vmatpush1.bf16.msra.mxu0 %v1641
    %1718 = vmatprep.subr.bf16.mxu0 0
    %1719 = vmatpush1.bf16.msra.mxu0 %v1642
    %1720 = vmatprep.subr.bf16.mxu0 0
    %1721 = vmatpush1.bf16.msra.mxu0 %v1643
    %1722 = vmatprep.subr.bf16.mxu0 0
    %1723 = vmatpush1.bf16.msra.mxu0 %v1644
    %1724 = vmatprep.subr.bf16.mxu0 0
    %1725 = vmatpush1.bf16.msra.mxu0 %v1645
    %1726 = vmatprep.subr.bf16.mxu0 0
    %1727 = vmatpush1.bf16.msra.mxu0 %v1646
    %1728 = vmatprep.subr.bf16.mxu0 0
    %1729 = vmatpush1.bf16.msra.mxu0 0
    %1730 = vmatprep.subr.bf16.mxu0 0
    %1731 = vmatpush1.bf16.msra.mxu0 0
    %1732 = vmatprep.subr.bf16.mxu0 0
    %1733 = vmatpush1.bf16.msra.mxu0 0
    %1734 = vmatprep.subr.bf16.mxu0 0
    %1735 = vmatpush1.bf16.msra.mxu0 0
    %1736 = vmatprep.subr.bf16.mxu0 0
    %1737 = vmatpush1.bf16.msra.mxu0 0
    %1738 = vmatprep.subr.bf16.mxu0 0
    %1739 = vmatpush1.bf16.msra.mxu0 0
    %1740 = vmatprep.subr.bf16.mxu0 0
    %1741 = vmatpush1.bf16.msra.mxu0 0
    %1742 = vmatprep.subr.bf16.mxu0 0
    %1743 = vmatpush1.bf16.msra.mxu0 0
    %1744 = vmatprep.mubr.bf16.mxu0 0
    %1745 = vmatmul.mubr.bf16.gmra.mrb[0].mxu0 %v1471
    %v1746 = vpop.f32.mrb[0].mxu0
    %v1747 = vadd.f32 %v1706, %v1746
    %v1748 = vpop.f32.mrb[0].mxu0
    %v1749 = vpop.f32.mrb[0].mxu0
    %v1750 = vadd.f32 %v1709, %v1749
    %v1751 = vpop.f32.mrb[0].mxu0
    %1752 = vdwg.mxu0
    %v1753 = vmax.f32 %v1747, 0.0
    %v1754 = vmax.f32 %v1750, 0.0
    %v1755 = vpack.c.bf16 %v1754, %v1753
    %v1756 = vld [vmem:[#allocation8] sm:$0xf]
    %v1757 = vld [vmem:[#allocation8 + $0x4] sm:$0xf]
    %v1758 = vld [vmem:[#allocation8 + $0x8] sm:$0xf]
    %v1759 = vld [vmem:[#allocation8 + $0xc] sm:$0xf]
    %v1760 = vld [vmem:[#allocation8 + $0x10] sm:$0xf]
    %v1761 = vld [vmem:[#allocation8 + $0x14] sm:$0xf]
    %v1762 = vld [vmem:[#allocation8 + $0x18] sm:$0xf]
    %v1763 = vld [vmem:[#allocation8 + $0x1c] sm:$0xf]
    %v1764 = vld [vmem:[#allocation8 + $0x20] sm:$0xf]
    %v1765 = vld [vmem:[#allocation8 + $0x24] sm:$0xf]
    %v1766 = vld [vmem:[#allocation8 + $0x28] sm:$0xf]
    %v1767 = vld [vmem:[#allocation8 + $0x2c] sm:$0xf]
    %v1768 = vld [vmem:[#allocation8 + $0x30] sm:$0xf]
    %v1769 = vld [vmem:[#allocation8 + $0x34] sm:$0xf]
    %v1770 = vld [vmem:[#allocation8 + $0x38] sm:$0xf]
    %v1771 = vld [vmem:[#allocation8 + $0x3c] sm:$0xf]
    %v1772 = vld [vmem:[%s6] sm:$0x1]
    %v1774 = vlaneseq
    %v1775 = vshrl.u32 %v1774, 7
    %v1776 = vsub.s32 0, %v1775
    %v1777 = vrot.slane %v1772, %v1776
    %v1795 = vunpack.c.l.b16 %v1756
    %v1796 = vunpack.c.l.b16 %v1757
    %v1797 = vunpack.c.l.b16 %v1758
    %v1798 = vunpack.c.l.b16 %v1759
    %v1799 = vunpack.c.l.b16 %v1760
    %v1800 = vunpack.c.l.b16 %v1761
    %v1801 = vunpack.c.l.b16 %v1762
    %v1802 = vunpack.c.l.b16 %v1763
    %v1803 = vunpack.c.l.b16 %v1764
    %v1804 = vunpack.c.l.b16 %v1765
    %v1805 = vunpack.c.l.b16 %v1766
    %v1806 = vunpack.c.l.b16 %v1767
    %v1807 = vunpack.c.l.b16 %v1768
    %v1808 = vunpack.c.l.b16 %v1769
    %v1809 = vunpack.c.l.b16 %v1770
    %v1810 = vunpack.c.l.b16 %v1771
    %v1811 = vpack.c.b16 %v1796, %v1795
    %v1812 = vpack.c.b16 %v1798, %v1797
    %v1813 = vpack.c.b16 %v1800, %v1799
    %v1814 = vpack.c.b16 %v1802, %v1801
    %v1815 = vpack.c.b16 %v1804, %v1803
    %v1816 = vpack.c.b16 %v1806, %v1805
    %v1817 = vpack.c.b16 %v1808, %v1807
    %v1818 = vpack.c.b16 %v1810, %v1809
    %1827 = vmatprep.subr.bf16.mxu0 0
    %1828 = vmatpush1.bf16.msra.mxu0 %v1811
    %1829 = vmatprep.subr.bf16.mxu0 0
    %1830 = vmatpush1.bf16.msra.mxu0 %v1812
    %1831 = vmatprep.subr.bf16.mxu0 0
    %1832 = vmatpush1.bf16.msra.mxu0 %v1813
    %1833 = vmatprep.subr.bf16.mxu0 0
    %1834 = vmatpush1.bf16.msra.mxu0 %v1814
    %1835 = vmatprep.subr.bf16.mxu0 0
    %1836 = vmatpush1.bf16.msra.mxu0 %v1815
    %1837 = vmatprep.subr.bf16.mxu0 0
    %1838 = vmatpush1.bf16.msra.mxu0 %v1816
    %1839 = vmatprep.subr.bf16.mxu0 0
    %1840 = vmatpush1.bf16.msra.mxu0 %v1817
    %1841 = vmatprep.subr.bf16.mxu0 0
    %1842 = vmatpush1.bf16.msra.mxu0 %v1818
    %1843 = vmatprep.subr.bf16.mxu0 0
    %1844 = vmatpush1.bf16.msra.mxu0 0
    %1845 = vmatprep.subr.bf16.mxu0 0
    %1846 = vmatpush1.bf16.msra.mxu0 0
    %1847 = vmatprep.subr.bf16.mxu0 0
    %1848 = vmatpush1.bf16.msra.mxu0 0
    %1849 = vmatprep.subr.bf16.mxu0 0
    %1850 = vmatpush1.bf16.msra.mxu0 0
    %1851 = vmatprep.subr.bf16.mxu0 0
    %1852 = vmatpush1.bf16.msra.mxu0 0
    %1853 = vmatprep.subr.bf16.mxu0 0
    %1854 = vmatpush1.bf16.msra.mxu0 0
    %1855 = vmatprep.subr.bf16.mxu0 0
    %1856 = vmatpush1.bf16.msra.mxu0 0
    %1857 = vmatprep.subr.bf16.mxu0 0
    %1858 = vmatpush1.bf16.msra.mxu0 0
    %1859 = vmatprep.mubr.bf16.mxu0 0
    %1860 = vmatmul.mubr.bf16.gmra.mrb[0].mxu0 %v1755
    %v1861 = vpop.f32.mrb[0].mxu0
    %v1862 = vadd.f32 %v1777, %v1861
    %v1863 = vpop.f32.mrb[0].mxu0
    %v1864 = vpop.f32.mrb[0].mxu0
    %v1865 = vadd.f32 %v1777, %v1864
    %v1866 = vpop.f32.mrb[0].mxu0
    %1867 = vdwg.mxu0
    %v1868 = vsub.f32 0.0, %v1862
    %v1869 = vsub.f32 0.0, %v1865
    %v1870 = vmul.f32 %v1868, 1.442695
    %v1871 = vpow.pop %v1870
    %v1872 = vmul.f32 %v1869, 1.442695
    %v1873 = vpow.pop %v1872
    %v1874 = vadd.f32 %v1871, 1.0
    %v1875 = vadd.f32 %v1873, 1.0
    %v1876 = vrcp.pop %v1874
    %v1877 = vrcp.pop %v1875
    %v1878 = vpack.c.bf16 %v1877, %v1876
    %v1880 = vunpack.c.l.b16 %v1878
    %v1881 = vunpack.c.h.b16 %v1878
    %v1882 = vpack.c.b16 %v1880, %v1880
    %v1883 = vpack.c.b16 %v1881, %v1881
    %1886 = vst [vmem:[#allocation10] sm:$0xf] %v1882
    %1887 = vst [vmem:[#allocation10 + $0x4] sm:$0xf] %v1883
    // Predicated region
    $region46: #{tpu_custom_call.1} parent=1 // pred_check
      _
    $region47: #{tpu_custom_call.1} parent=1 // pred_check_branch
      %1889 = sbr.rel (0) target = $region49
    $region48: #{tpu_custom_call.1} parent=1 // pred_region
      %s1891 = ssub.s32 128, 128
      %1892 = vsyncadd [#allocation4], %s1891
      %s1893 = sshll.u32 [#allocation10], 4
      %s1894 = int_to_ptr.vmem [resolvable:$true] %s1893
      %1899 = dma.vmem_to_hbm [thread:$0]  %s1894, 128, %s7, [#allocation4], 64, 64, 4
    $region49: #{tpu_custom_call.1} parent=1 // pred_fallthru
      _
    // Predicated region
    $region50: #{tpu_custom_call.1} parent=1 // pred_check
      _
    $region51: #{tpu_custom_call.1} parent=1 // pred_check_branch
      %1901 = sbr.rel (0) target = $region53
    $region52: #{tpu_custom_call.1} parent=1 // pred_region
      %1902 = dma.done [#allocation4], 128
    $region53: #{tpu_custom_call.1} parent=1 // pred_fallthru
      _
    %1903 = vsyncpa [#allocation3], 1
    %1904 = vsyncpa [#allocation6], 1
    %1905 = vsyncpa [#allocation9], 1
    %1906 = vsyncpa [#allocation4], 1

</llo_original>
